<compile_context>
chip_gen: v7x
topology: tpu7x:2x2x1
jax: 0.10.0
libtpu: 0.0.40
codegen_flags: <defaults>
</compile_context>

<pallas_src>
import functools

import jax
import jax.numpy as jnp
from jax.experimental import pallas as pl
from jax.experimental.pallas import tpu as pltpu


def _round_up(x, m):
    return ((x + m - 1) // m) * m


_VMEM_CAP = None


def _vmem_cap_bytes():
    """Physical VMEM capacity in bytes; conservative 64 MiB (v7x) fallback."""
    global _VMEM_CAP
    if _VMEM_CAP is None:
        cap = 64 * 1024 * 1024
        try:
            info = pltpu.get_tpu_info()
            cap = int(getattr(info, "vmem_capacity_bytes", cap)) or cap
        except Exception:
            pass
        _VMEM_CAP = cap
    return _VMEM_CAP


def _pick_tm(M, tm_max):
    """Row tile: multiple of 128; prefer >=2 grid blocks (megacore) when M>128,
    then minimal pad rows, then the largest tile (fewest grid steps)."""
    cands = [c for c in (128, 256, 512, 1024) if c <= max(tm_max, 128)]
    best, best_key = cands[0], None
    for c in cands:
        Mp = _round_up(M, c)
        n_blk = Mp // c
        pad = Mp - M
        key = (0 if (n_blk >= 2 or M <= 128) else 1, pad, -c)
        if best_key is None or key < best_key:
            best, best_key = c, key
    return best


def _gelu_tanh(h):
    # torch.nn.GELU(approximate='tanh'): factored polynomial keeps VALU work
    # low; tanh goes to the EUP (separate bundle slot).
    c = 0.7978845608028654          # sqrt(2/pi)
    c2 = c * 0.044715
    return 0.5 * h * (1.0 + jnp.tanh(h * (c + c2 * (h * h))))


# ---------------------------------------------------------------------------
# Fast path: full (padded) weights stay VMEM-resident; 1-D grid over row tiles.
# ---------------------------------------------------------------------------
def _mlp_resident_kernel(x_ref, w1_ref, b1_ref, w2_ref, b2_ref, o_ref):
    h = jnp.dot(x_ref[...], w1_ref[...], preferred_element_type=jnp.float32)
    g = _gelu_tanh(h + b1_ref[...])
    o_ref[...] = (jnp.dot(g.astype(jnp.bfloat16), w2_ref[...],
                          preferred_element_type=jnp.float32)
                  + b2_ref[...]).astype(o_ref.dtype)


# ---------------------------------------------------------------------------
# Fallback (large H): hidden dim tiled along a reduction grid axis; the f32
# output block (block index constant across k) doubles as the accumulator.
# ---------------------------------------------------------------------------
def _mlp_htiled_kernel(x_ref, w1_ref, b1_ref, w2_ref, b2_ref, o_ref):
    k = pl.program_id(1)

    @pl.when(k == 0)
    def _():
        o_ref[...] = jnp.zeros_like(o_ref)

    h = jnp.dot(x_ref[...], w1_ref[...], preferred_element_type=jnp.float32)
    g = _gelu_tanh(h + b1_ref[...])
    o_ref[...] += jnp.dot(g.astype(jnp.bfloat16), w2_ref[...],
                          preferred_element_type=jnp.float32)

    @pl.when(k == pl.num_programs(1) - 1)
    def _():
        o_ref[...] += b2_ref[...]


@functools.partial(jax.jit, static_argnames=("tm", "th", "force_tiled"))
def _mlp_pallas(x2d, w1, b1, w2, b2, *, tm=512, th=256, force_tiled=False):
    """y2d = GELU_tanh(x2d @ W1 + b1) @ W2 + b2 as a single fused Pallas call.

    Arbitrary M, D, H handled by zero-padding (exact: padded x cols / W1 rows
    contribute 0, padded hidden cols give gelu(0)=0, padded output cols are
    sliced off).  Matmul operands are bf16 with f32 accumulation.
    """
    M, D = x2d.shape
    H = w1.shape[1]

    Dp = _round_up(D, 128)
    th = min(th, _round_up(H, 128))
    Hp = _round_up(H, th)
    tm_eff = _pick_tm(M, tm)
    Mp = _round_up(M, tm_eff)

    # bf16 input; skip no-op pads so the wrapper adds no extra HBM copies.
    x_p = x2d.astype(jnp.bfloat16)
    if (Mp, Dp) != (M, D):
        x_p = jnp.pad(x_p, ((0, Mp - M), (0, Dp - D)))
    w1_p = w1.astype(jnp.bfloat16)
    if (Dp, Hp) != (D, H):
        w1_p = jnp.pad(w1_p, ((0, Dp - D), (0, Hp - H)))
    b1_p = b1.astype(jnp.float32)
    if Hp != H:
        b1_p = jnp.pad(b1_p, ((0, 0), (0, Hp - H)))
    w2_p = w2.astype(jnp.bfloat16)
    if (Hp, Dp) != (H, D):
        w2_p = jnp.pad(w2_p, ((0, Hp - H), (0, Dp - D)))
    b2_p = b2.astype(jnp.float32)
    if Dp != D:
        b2_p = jnp.pad(b2_p, ((0, 0), (0, Dp - D)))

    cap = _vmem_cap_bytes()
    n_rows = Mp // tm_eff

    w_bytes = Dp * Hp * 2 + Hp * 4 + Hp * Dp * 2 + Dp * 4
    resident_vmem = (2 * w_bytes                 # weight specs (2x buffered)
                     + 2 * tm_eff * Dp * 2       # x tiles (bf16, double-buffered)
                     + 2 * tm_eff * Dp * 4       # out tiles (f32)
                     + 2 * tm_eff * Hp * 4)      # h/g intermediates headroom
    use_resident = (not force_tiled) and resident_vmem <= int(0.55 * cap)

    cost = pl.CostEstimate(
        flops=4 * Mp * Dp * Hp,                  # two matmuls
        transcendentals=Mp * Hp,                 # tanh per hidden activation
        bytes_accessed=Mp * Dp * 2 + w_bytes + Mp * Dp * 4,
    )
    out_shape = jax.ShapeDtypeStruct((Mp, Dp), jnp.float32)

    if use_resident:
        vmem_limit = min(max(int(1.5 * resident_vmem), 32 * 1024 * 1024),
                         int(0.8 * cap))
        out = pl.pallas_call(
            _mlp_resident_kernel,
            out_shape=out_shape,
            grid_spec=pltpu.PrefetchScalarGridSpec(
                num_scalar_prefetch=0,
                grid=(n_rows,),
                in_specs=[
                    pl.BlockSpec((tm_eff, Dp), lambda i: (i, 0)),   # x rows
                    pl.BlockSpec((Dp, Hp), lambda i: (0, 0)),       # W1 (resident)
                    pl.BlockSpec((1, Hp), lambda i: (0, 0)),        # b1
                    pl.BlockSpec((Hp, Dp), lambda i: (0, 0)),       # W2 (resident)
                    pl.BlockSpec((1, Dp), lambda i: (0, 0)),        # b2
                ],
                out_specs=pl.BlockSpec((tm_eff, Dp), lambda i: (i, 0)),
            ),
            compiler_params=pltpu.CompilerParams(
                dimension_semantics=("parallel",),
                vmem_limit_bytes=vmem_limit,
            ),
            cost_estimate=cost,
        )(x_p, w1_p, b1_p, w2_p, b2_p)
    else:
        tiled_vmem = (2 * tm_eff * Dp * 2
                      + 2 * (Dp * th * 2 + th * 4 + th * Dp * 2 + Dp * 4)
                      + 2 * tm_eff * Dp * 4
                      + 2 * tm_eff * th * 4)
        vmem_limit = min(max(2 * tiled_vmem, 32 * 1024 * 1024), int(0.8 * cap))
        out = pl.pallas_call(
            _mlp_htiled_kernel,
            out_shape=out_shape,
            grid_spec=pltpu.PrefetchScalarGridSpec(
                num_scalar_prefetch=0,
                grid=(n_rows, Hp // th),
                in_specs=[
                    pl.BlockSpec((tm_eff, Dp), lambda i, k: (i, 0)),  # x rows
                    pl.BlockSpec((Dp, th), lambda i, k: (0, k)),      # W1 slice
                    pl.BlockSpec((1, th), lambda i, k: (0, k)),       # b1 slice
                    pl.BlockSpec((th, Dp), lambda i, k: (k, 0)),      # W2 slice
                    pl.BlockSpec((1, Dp), lambda i, k: (0, 0)),       # b2
                ],
                out_specs=pl.BlockSpec((tm_eff, Dp), lambda i, k: (i, 0)),
            ),
            compiler_params=pltpu.CompilerParams(
                dimension_semantics=("parallel", "arbitrary"),
                vmem_limit_bytes=vmem_limit,
            ),
            cost_estimate=cost,
        )(x_p, w1_p, b1_p, w2_p, b2_p)

    if (Mp, Dp) != (M, D):
        out = out[:M, :D]
    return out


def make_fn_params(key, d_model, d_hidden):
    """Deterministic parameter init for fn = Linear(D,H) -> GELU -> Linear(H,D)."""
    k1, k2, k3, k4 = jax.random.split(key, 4)
    s1 = 1.0 / jnp.sqrt(d_model)
    s2 = 1.0 / jnp.sqrt(d_hidden)
    w1 = jax.random.uniform(k1, (d_model, d_hidden), jnp.float32, -s1, s1)
    b1 = jax.random.uniform(k2, (1, d_hidden), jnp.float32, -s1, s1)
    w2 = jax.random.uniform(k3, (d_hidden, d_model), jnp.float32, -s2, s2)
    b2 = jax.random.uniform(k4, (1, d_model), jnp.float32, -s2, s2)
    return w1, b1, w2, b2


def fn_apply(x, params, *, tm=512, force_tiled=False):
    """The wrapped real-valued fn: token-wise MLP, hot path in Pallas."""
    w1, b1, w2, b2 = params
    B, N, D = x.shape
    y2d = _mlp_pallas(x.reshape(B * N, D), w1, b1, w2, b2,
                      tm=tm, force_tiled=force_tiled)
    return y2d.reshape(B, N, D)


def complex_fn_forward(x, params, *, tm=512, force_tiled=False):
    """ComplexFn.forward.

    complex64 input: deinterleave ONCE into a stacked [2*B, N, D] real slab,
    folding the bf16 cast into that copy, run a single fused Pallas call over
    real+imag (weights staged once, grid twice as long), then recombine.
    Real input: apply fn directly.
    """
    if jnp.iscomplexobj(x):
        x_stacked = jnp.concatenate(
            [jnp.real(x).astype(jnp.bfloat16),
             jnp.imag(x).astype(jnp.bfloat16)], axis=0)      # (2B, N, D) bf16
        y_stacked = fn_apply(x_stacked, params, tm=tm, force_tiled=force_tiled)
        yr, yi = jnp.split(y_stacked, 2, axis=0)
        return jax.lax.complex(yr, yi)                        # complex64
    return fn_apply(x, params, tm=tm, force_tiled=force_tiled)


if __name__ == "__main__":
    # Small but lane-dense shapes consistent with a mixer block:
    # batch=2, seq=128, d_model=128, d_hidden=256.
    B, N, D, H = 2, 128, 128, 256

    key = jax.random.PRNGKey(0)
    k_params, k_re, k_im, k_p2 = jax.random.split(key, 4)

    params = make_fn_params(k_params, D, H)

    # complex64 input -> exercises the complex branch of ComplexFn.forward
    xr = jax.random.normal(k_re, (B, N, D), jnp.float32)
    xi = jax.random.normal(k_im, (B, N, D), jnp.float32)
    x_complex = jax.lax.complex(xr, xi)  # complex64

    y_complex = complex_fn_forward(x_complex, params)
    jax.block_until_ready(y_complex)
    assert y_complex.dtype == jnp.complex64
    assert y_complex.shape == (B, N, D)

    # real-valued input -> exercises the else branch
    y_real = complex_fn_forward(xr, params)
    jax.block_until_ready(y_real)
    assert y_real.dtype == jnp.float32
    assert y_real.shape == (B, N, D)

    # pure-JAX reference mirroring the kernel's bf16-operand / f32-accumulate
    # matmuls and tanh-GELU.
    def ref_fn(a, p):
        w1, b1, w2, b2 = p
        d = a.shape[-1]
        a2 = a.reshape(-1, d)
        h = jnp.dot(a2.astype(jnp.bfloat16), w1.astype(jnp.bfloat16),
                    preferred_element_type=jnp.float32) + b1
        c = 0.7978845608028654
        g = 0.5 * h * (1.0 + jnp.tanh(h * (c + (c * 0.044715) * (h * h))))
        y = jnp.dot(g.astype(jnp.bfloat16), w2.astype(jnp.bfloat16),
                    preferred_element_type=jnp.float32) + b2
        return y.reshape(a.shape)

    ref_c = jax.lax.complex(ref_fn(xr, params), ref_fn(xi, params))
    assert jnp.allclose(y_complex, ref_c, atol=2e-3, rtol=2e-3)
    assert jnp.allclose(y_real, ref_fn(xr, params), atol=2e-3, rtol=2e-3)

    # Also exercise the H-tiled fallback path (taken when the weights exceed
    # the per-generation VMEM budget) to make sure it compiles and matches.
    params2 = make_fn_params(k_p2, D, 512)
    y_tiled = complex_fn_forward(xr, params2, force_tiled=True)
    jax.block_until_ready(y_tiled)
    assert jnp.allclose(y_tiled, ref_fn(xr, params2), atol=2e-3, rtol=2e-3)

    print("KERNEL_OK")
</pallas_src>

<mosaic_0001>
module attributes {stable_mosaic.version = 11 : i64} {
  func.func @_mlp_resident_kernel(%arg0: i32, %arg1: memref<256x128xbf16, #tpu.memory_space<vmem>>, %arg2: memref<128x256xbf16, #tpu.memory_space<vmem>>, %arg3: memref<1x256xf32, #tpu.memory_space<vmem>>, %arg4: memref<256x128xbf16, #tpu.memory_space<vmem>>, %arg5: memref<1x128xf32, #tpu.memory_space<vmem>>, %arg6: memref<256x128xf32, #tpu.memory_space<vmem>>) attributes {dimension_semantics = [#tpu.dimension_semantics<parallel>], iteration_bounds = array<i64: 2>, scalar_prefetch = 0 : i64, scratch_operands = 0 : i64, tpu.core_type = #tpu.core_type<tc>, window_params = [{transform_indices = @transform_0, window_bounds = array<i64: 256, 128>}, {pipeline_mode = #tpu.pipeline_mode<synchronous>, transform_indices = @transform_1, window_bounds = array<i64: 128, 256>}, {pipeline_mode = #tpu.pipeline_mode<synchronous>, transform_indices = @transform_2, window_bounds = array<i64: 1, 256>}, {pipeline_mode = #tpu.pipeline_mode<synchronous>, transform_indices = @transform_3, window_bounds = array<i64: 256, 128>}, {pipeline_mode = #tpu.pipeline_mode<synchronous>, transform_indices = @transform_4, window_bounds = array<i64: 1, 128>}, {transform_indices = @transform_5, window_bounds = array<i64: 256, 128>}]} {
    %c0 = arith.constant 0 : index
    %c0_0 = arith.constant 0 : index
    %0 = vector.load %arg1[%c0, %c0_0] : memref<256x128xbf16, #tpu.memory_space<vmem>>, vector<256x128xbf16>
    %c0_1 = arith.constant 0 : index
    %c0_2 = arith.constant 0 : index
    %1 = vector.load %arg2[%c0_1, %c0_2] : memref<128x256xbf16, #tpu.memory_space<vmem>>, vector<128x256xbf16>
    %cst = arith.constant dense<0.000000e+00> : vector<256x256xf32>
    %2 = tpu.matmul %0, %1, %cst {dimension_numbers = #tpu.dot_dimension_numbers<[1], [0], [0], [1], [0, 0, 1, 1], [], []>} : vector<256x128xbf16>, vector<128x256xbf16>, vector<256x256xf32> -> vector<256x256xf32>
    %c0_3 = arith.constant 0 : index
    %c0_4 = arith.constant 0 : index
    %3 = vector.load %arg3[%c0_3, %c0_4] : memref<1x256xf32, #tpu.memory_space<vmem>>, vector<1x256xf32>
    %4 = vector.broadcast %3 : vector<1x256xf32> to vector<256x256xf32>
    %5 = arith.addf %2, %4 : vector<256x256xf32>
    %cst_5 = arith.constant 5.000000e-01 : f32
    %6 = vector.broadcast %cst_5 : f32 to vector<256x256xf32>
    %7 = arith.mulf %6, %5 : vector<256x256xf32>
    %8 = arith.mulf %5, %5 : vector<256x256xf32>
    %cst_6 = arith.constant 0.0356774069 : f32
    %9 = vector.broadcast %cst_6 : f32 to vector<256x256xf32>
    %10 = arith.mulf %9, %8 : vector<256x256xf32>
    %cst_7 = arith.constant 0.797884583 : f32
    %11 = vector.broadcast %cst_7 : f32 to vector<256x256xf32>
    %12 = arith.addf %11, %10 : vector<256x256xf32>
    %13 = arith.mulf %5, %12 : vector<256x256xf32>
    %14 = math.tanh %13 : vector<256x256xf32>
    %cst_8 = arith.constant 1.000000e+00 : f32
    %15 = vector.broadcast %cst_8 : f32 to vector<256x256xf32>
    %16 = arith.addf %15, %14 : vector<256x256xf32>
    %17 = arith.mulf %7, %16 : vector<256x256xf32>
    %18 = arith.truncf %17 : vector<256x256xf32> to vector<256x256xbf16>
    %c0_9 = arith.constant 0 : index
    %c0_10 = arith.constant 0 : index
    %19 = vector.load %arg4[%c0_9, %c0_10] : memref<256x128xbf16, #tpu.memory_space<vmem>>, vector<256x128xbf16>
    %cst_11 = arith.constant dense<0.000000e+00> : vector<256x128xf32>
    %20 = tpu.matmul %18, %19, %cst_11 {dimension_numbers = #tpu.dot_dimension_numbers<[1], [0], [0], [1], [0, 0, 1, 1], [], []>} : vector<256x256xbf16>, vector<256x128xbf16>, vector<256x128xf32> -> vector<256x128xf32>
    %c0_12 = arith.constant 0 : index
    %c0_13 = arith.constant 0 : index
    %21 = vector.load %arg5[%c0_12, %c0_13] : memref<1x128xf32, #tpu.memory_space<vmem>>, vector<1x128xf32>
    %22 = vector.broadcast %21 : vector<1x128xf32> to vector<256x128xf32>
    %23 = arith.addf %20, %22 : vector<256x128xf32>
    %c0_14 = arith.constant 0 : index
    %c0_15 = arith.constant 0 : index
    %24 = vector.load %arg6[%c0_14, %c0_15] : memref<256x128xf32, #tpu.memory_space<vmem>>, vector<256x128xf32>
    tpu.vector_store %arg6[%c0_14, %c0_15], %23 {strides = array<i32>} : memref<256x128xf32, #tpu.memory_space<vmem>>, vector<256x128xf32>,
    return
  }
  func.func @transform_0(%arg0: i32) -> (i32, i32) {
    %c0_i32 = arith.constant 0 : i32
    %c0_i32_0 = arith.constant 0 : i32
    return %arg0, %c0_i32 : i32, i32
  }
  func.func @transform_1(%arg0: i32) -> (i32, i32) {
    %c0_i32 = arith.constant 0 : i32
    %c0_i32_0 = arith.constant 0 : i32
    %c0_i32_1 = arith.constant 0 : i32
    return %c0_i32, %c0_i32_0 : i32, i32
  }
  func.func @transform_2(%arg0: i32) -> (i32, i32) {
    %c0_i32 = arith.constant 0 : i32
    %c0_i32_0 = arith.constant 0 : i32
    %c0_i32_1 = arith.constant 0 : i32
    return %c0_i32, %c0_i32_0 : i32, i32
  }
  func.func @transform_3(%arg0: i32) -> (i32, i32) {
    %c0_i32 = arith.constant 0 : i32
    %c0_i32_0 = arith.constant 0 : i32
    %c0_i32_1 = arith.constant 0 : i32
    return %c0_i32, %c0_i32_0 : i32, i32
  }
  func.func @transform_4(%arg0: i32) -> (i32, i32) {
    %c0_i32 = arith.constant 0 : i32
    %c0_i32_0 = arith.constant 0 : i32
    %c0_i32_1 = arith.constant 0 : i32
    return %c0_i32, %c0_i32_0 : i32, i32
  }
  func.func @transform_5(%arg0: i32) -> (i32, i32) {
    %c0_i32 = arith.constant 0 : i32
    %c0_i32_0 = arith.constant 0 : i32
    return %arg0, %c0_i32 : i32, i32
  }
}

</mosaic_0001>

<llo_original>
// kernel: _mlp_pallas.1
$region0: #{_mlp_pallas.1}
  #allocation0 [shape = 'u32[]', space=smem, size = 0x4, offset = 0x4, fixed_abs, tag = 'smem constant byte address 0x4 - core index']
  #allocation1 [shape = 'u32[144,128]{1,0:T(1,128)}', space=vmem, size = 0x12000, scoped, tag = 'internal scratch']
  %s0 = inlined_call_operand.vmem [shape: bf16[512,128], index: 0, kind: input, shape index: {}]
  %s1 = inlined_call_operand.vmem [shape: bf16[128,256], index: 1, kind: input, shape index: {}]
  %s2 = inlined_call_operand.vmem [shape: f32[1,256], index: 2, kind: input, shape index: {}]
  %s3 = inlined_call_operand.vmem [shape: bf16[256,128], index: 3, kind: input, shape index: {}]
  %s4 = inlined_call_operand.vmem [shape: f32[1,128], index: 4, kind: input, shape index: {}]
  %s5 = inlined_call_operand.hbm [shape: f32[512,128], index: 5, kind: output, shape index: {}]
  %s6 = sld [smem:[#allocation0]]
  $region53: #{_mlp_pallas.1} parent=0
    _
  %s8 = ssub.s32 1, %s6
  %s9 = scalar_select 0, %s8, %s6
  $region1: #{_mlp_pallas.1} parent=0
    #allocation2 [shape = 'u8[262144]{0}', space=vmem, size = 0x40000, scoped, tag = 'output window, operand 0']
    #allocation3 [shape = 's32[2]{0}', space=sflag, size = 0x8, scoped, tag = 'scoped memory for _mlp_pallas.1']
    %10 = vsyncpa [#allocation3], 0
    %s11 = scalar_lea.sflag [#allocation3], 1
    %12 = vsyncpa %s11, 0
    loop: start=0, step=1, limit=4
    $region2: #{_mlp_pallas.1} parent=1 // loop_pre_header
      _
    $region3: #{_mlp_pallas.1} parent=1 // loop_header
      %s14 = sphi 0, %s18
      %p15 = scmp.ge.s32.totalorder %s14, 4
      %s24 = sphi 0, %s26
      %s27 = sphi 0, %s24
      %s28 = sphi 0, %s27
      %s44 = sphi 0, %s28
      %s48 = sphi 0, %s48
      %s50 = sphi 0, %s48
      %s51 = sphi 0, %s50
      %s65 = sphi 0, %s51
      %s69 = sphi 0, %s69
      %s71 = sphi 0, %s69
      %s72 = sphi 0, %s71
      %s86 = sphi 0, %s72
      %s90 = sphi 0, %s90
      %s92 = sphi 0, %s90
      %s93 = sphi 0, %s92
      %s107 = sphi 0, %s93
      %s111 = sphi 0, %s111
      %s113 = sphi 0, %s111
      %s114 = sphi 0, %s113
      %s128 = sphi 0, %s114
      %s134 = sphi 0, %s136
      %s137 = sphi 0, %s134
      %s138 = sphi 0, %s137
      %s154 = sphi 0, %s138
    $region4: #{_mlp_pallas.1} parent=1 // loop_header_branch
      %17 = sbr.rel (%p15) target = $region8
    $region5: #{_mlp_pallas.1} parent=1 // loop_body
      %s19 = ssub.s32 %s14, 1
      %s20 = ssub.s32 %s14, 2
      %s21 = sadd.s32 %s14, 1
      %s22 = ssub.s32 %s14, %s21
      %p23 = scmp.eq.s32.totalorder %s22, 0
      %s25 = sadd.s32 %s24, 1
      %s26 = scalar_select %p23, %s24, %s25
      %p29 = pneg %p23
      %p30 = scmp.eq.s32.totalorder %s14, 1
      %p31 = por %p29, %p30
      %p32 = scmp.ne.s32.totalorder %s24, %s27
      %p33 = scmp.eq.s32.totalorder %s14, 0
      %p34 = por %p32, %p33
      %p35 = scmp.ne.s32.totalorder %s24, %s27
      %p36 = scmp.eq.s32.totalorder %s19, 1
      %p37 = por %p35, %p36
      %p38 = scmp.ne.s32.totalorder %s27, %s28
      %p39 = scmp.eq.s32.totalorder %s19, 0
      %p40 = por %p38, %p39
      %p41 = scmp.ne.s32.totalorder %s27, %s28
      %p42 = scmp.eq.s32.totalorder %s20, 1
      %p43 = por %p41, %p42
      %p45 = scmp.ne.s32.totalorder %s28, %s44
      %p46 = scmp.eq.s32.totalorder %s20, 0
      %p47 = por %p45, %p46
      %s49 = sadd.s32 %s48, 1
      %p52 = scmp.eq.s32.totalorder %s14, 1
      %p53 = scmp.ne.s32.totalorder %s48, %s50
      %p54 = scmp.eq.s32.totalorder %s14, 0
      %p55 = por %p53, %p54
      %p56 = scmp.ne.s32.totalorder %s48, %s50
      %p57 = scmp.eq.s32.totalorder %s19, 1
      %p58 = por %p56, %p57
      %p59 = scmp.ne.s32.totalorder %s50, %s51
      %p60 = scmp.eq.s32.totalorder %s19, 0
      %p61 = por %p59, %p60
      %p62 = scmp.ne.s32.totalorder %s50, %s51
      %p63 = scmp.eq.s32.totalorder %s20, 1
      %p64 = por %p62, %p63
      %p66 = scmp.ne.s32.totalorder %s51, %s65
      %p67 = scmp.eq.s32.totalorder %s20, 0
      %p68 = por %p66, %p67
      %s70 = sadd.s32 %s69, 1
      %p73 = scmp.eq.s32.totalorder %s14, 1
      %p74 = scmp.ne.s32.totalorder %s69, %s71
      %p75 = scmp.eq.s32.totalorder %s14, 0
      %p76 = por %p74, %p75
      %p77 = scmp.ne.s32.totalorder %s69, %s71
      %p78 = scmp.eq.s32.totalorder %s19, 1
      %p79 = por %p77, %p78
      %p80 = scmp.ne.s32.totalorder %s71, %s72
      %p81 = scmp.eq.s32.totalorder %s19, 0
      %p82 = por %p80, %p81
      %p83 = scmp.ne.s32.totalorder %s71, %s72
      %p84 = scmp.eq.s32.totalorder %s20, 1
      %p85 = por %p83, %p84
      %p87 = scmp.ne.s32.totalorder %s72, %s86
      %p88 = scmp.eq.s32.totalorder %s20, 0
      %p89 = por %p87, %p88
      %s91 = sadd.s32 %s90, 1
      %p94 = scmp.eq.s32.totalorder %s14, 1
      %p95 = scmp.ne.s32.totalorder %s90, %s92
      %p96 = scmp.eq.s32.totalorder %s14, 0
      %p97 = por %p95, %p96
      %p98 = scmp.ne.s32.totalorder %s90, %s92
      %p99 = scmp.eq.s32.totalorder %s19, 1
      %p100 = por %p98, %p99
      %p101 = scmp.ne.s32.totalorder %s92, %s93
      %p102 = scmp.eq.s32.totalorder %s19, 0
      %p103 = por %p101, %p102
      %p104 = scmp.ne.s32.totalorder %s92, %s93
      %p105 = scmp.eq.s32.totalorder %s20, 1
      %p106 = por %p104, %p105
      %p108 = scmp.ne.s32.totalorder %s93, %s107
      %p109 = scmp.eq.s32.totalorder %s20, 0
      %p110 = por %p108, %p109
      %s112 = sadd.s32 %s111, 1
      %p115 = scmp.eq.s32.totalorder %s14, 1
      %p116 = scmp.ne.s32.totalorder %s111, %s113
      %p117 = scmp.eq.s32.totalorder %s14, 0
      %p118 = por %p116, %p117
      %p119 = scmp.ne.s32.totalorder %s111, %s113
      %p120 = scmp.eq.s32.totalorder %s19, 1
      %p121 = por %p119, %p120
      %p122 = scmp.ne.s32.totalorder %s113, %s114
      %p123 = scmp.eq.s32.totalorder %s19, 0
      %p124 = por %p122, %p123
      %p125 = scmp.ne.s32.totalorder %s113, %s114
      %p126 = scmp.eq.s32.totalorder %s20, 1
      %p127 = por %p125, %p126
      %p129 = scmp.ne.s32.totalorder %s114, %s128
      %p130 = scmp.eq.s32.totalorder %s20, 0
      %p131 = por %p129, %p130
      %s132 = ssub.s32 %s14, %s21
      %p133 = scmp.eq.s32.totalorder %s132, 0
      %s135 = sadd.s32 %s134, 1
      %s136 = scalar_select %p133, %s134, %s135
      %p139 = pneg %p133
      %p140 = scmp.eq.s32.totalorder %s14, 1
      %p141 = por %p139, %p140
      %p142 = scmp.ne.s32.totalorder %s134, %s137
      %p143 = scmp.eq.s32.totalorder %s14, 0
      %p144 = por %p142, %p143
      %p145 = scmp.ne.s32.totalorder %s134, %s137
      %p146 = scmp.eq.s32.totalorder %s19, 1
      %p147 = por %p145, %p146
      %p148 = scmp.ne.s32.totalorder %s137, %s138
      %p149 = scmp.eq.s32.totalorder %s19, 0
      %p150 = por %p148, %p149
      %p151 = scmp.ne.s32.totalorder %s137, %s138
      %p152 = scmp.eq.s32.totalorder %s20, 1
      %p153 = por %p151, %p152
      %p155 = scmp.ne.s32.totalorder %s138, %s154
      %p156 = scmp.eq.s32.totalorder %s20, 0
      %p157 = por %p155, %p156
      %p158 = scmp.le.s32.totalorder 1, %s14
      %p159 = scmp.lt.s32.totalorder %s14, 3
      %p160 = pnand %p158, %p159
      %p161 = pneg %p160
      // Predicated region
      $region9: #{_mlp_pallas.1} parent=5 // pred_check
        _
      $region10: #{_mlp_pallas.1} parent=5 // pred_check_branch
        %163 = sbr.rel (%p160) target = $region12
      $region11: #{_mlp_pallas.1} parent=5 // pred_region
        %s164 = ssub.s32 %s14, 1
        // Predicated region
        $region13: #{_mlp_pallas.1} parent=11 // pred_check
          %p165 = pneg %p61
        $region14: #{_mlp_pallas.1} parent=11 // pred_check_branch
          %167 = sbr.rel (%p165) target = $region16
        $region15: #{_mlp_pallas.1} parent=11 // pred_region
          _
        $region16: #{_mlp_pallas.1} parent=11 // pred_fallthru
          _
        // Predicated region
        $region17: #{_mlp_pallas.1} parent=11 // pred_check
          %p168 = pneg %p82
        $region18: #{_mlp_pallas.1} parent=11 // pred_check_branch
          %170 = sbr.rel (%p168) target = $region20
        $region19: #{_mlp_pallas.1} parent=11 // pred_region
          _
        $region20: #{_mlp_pallas.1} parent=11 // pred_fallthru
          _
        // Predicated region
        $region21: #{_mlp_pallas.1} parent=11 // pred_check
          %p171 = pneg %p103
        $region22: #{_mlp_pallas.1} parent=11 // pred_check_branch
          %173 = sbr.rel (%p171) target = $region24
        $region23: #{_mlp_pallas.1} parent=11 // pred_region
          _
        $region24: #{_mlp_pallas.1} parent=11 // pred_fallthru
          _
        // Predicated region
        $region25: #{_mlp_pallas.1} parent=11 // pred_check
          %p174 = pneg %p124
        $region26: #{_mlp_pallas.1} parent=11 // pred_check_branch
          %176 = sbr.rel (%p174) target = $region28
        $region27: #{_mlp_pallas.1} parent=11 // pred_region
          _
        $region28: #{_mlp_pallas.1} parent=11 // pred_fallthru
          _
      $region12: #{_mlp_pallas.1} parent=5 // pred_fallthru
        _
      %p177 = scmp.lt.s32.totalorder %s14, 2
      // Predicated region
      $region29: #{_mlp_pallas.1} parent=5 // pred_check
        %p178 = pneg %p177
      $region30: #{_mlp_pallas.1} parent=5 // pred_check_branch
        %180 = sbr.rel (%p178) target = $region32
      $region31: #{_mlp_pallas.1} parent=5 // pred_region
        // Predicated region
        $region33: #{_mlp_pallas.1} parent=31 // pred_check
          %p181 = pneg %p34
        $region34: #{_mlp_pallas.1} parent=31 // pred_check_branch
          %183 = sbr.rel (%p181) target = $region36
        $region35: #{_mlp_pallas.1} parent=31 // pred_region
          %s184 = smul.u32 32, %s14
          %p185 = scmp.lt.s32.totalorder %s184, 63
          %s186 = scalar_select %p185, %s184, 63
          %s187 = smul.addr %s186, 4
          %s188 = scalar_lea.vmem %s0, %s187
          %s189 = smul.u32 32, %s14
        $region36: #{_mlp_pallas.1} parent=31 // pred_fallthru
          _
      $region32: #{_mlp_pallas.1} parent=5 // pred_fallthru
        _
      %p190 = scmp.le.s32.totalorder 1, %s14
      %p191 = scmp.lt.s32.totalorder %s14, 3
      %p192 = pnand %p190, %p191
      %p193 = pneg %p192
      // Predicated region
      $region37: #{_mlp_pallas.1} parent=5 // pred_check
        _
      $region38: #{_mlp_pallas.1} parent=5 // pred_check_branch
        %195 = sbr.rel (%p192) target = $region40
      $region39: #{_mlp_pallas.1} parent=5 // pred_region
        %s196 = ssub.s32 %s14, 1
        %s197 = smul.u32 32, %s19
        %p198 = scmp.lt.s32.totalorder %s197, 63
        %s199 = scalar_select %p198, %s197, 63
        %s200 = smul.addr %s199, 4
        %s201 = scalar_lea.vmem %s0, %s200
        %p202 = pneg %p40
        %p203 = pneg %p37
        %p204 = pneg %p61
        %p205 = pneg %p58
        %p206 = pneg %p82
        %p207 = pneg %p79
        %p208 = pneg %p103
        %p209 = pneg %p100
        %p210 = pneg %p124
        %p211 = pneg %p121
        %p212 = pneg %p150
        %p213 = pneg %p147
        %s214 = sand.u32 %s137, 1
        %s215 = scalar_lea.sflag [#allocation3], %s214
        %s216 = sand.u32 %s137, 1
        %s217 = smul.addr %s216, 256
        %s218 = scalar_lea.vmem [#allocation2], %s217
        %s219 = smul.u32 32, %s19
        %p220 = scmp.lt.s32.totalorder %s219, 63
        %s221 = scalar_select %p220, %s219, 63
        %s222 = smul.addr %s221, 4
        %s223 = scalar_lea.vmem %s0, %s222
        %s224 = smul.u32 32, %s19
        %s225 = smul.u32 32, %s19
        %v227 = vld [vmem:[%s223] sm:$0xf]
        %v228 = vld [vmem:[%s223 + $0x4] sm:$0xf]
        %v229 = vld [vmem:[%s223 + $0x8] sm:$0xf]
        %v230 = vld [vmem:[%s223 + $0xc] sm:$0xf]
        %v231 = vld [vmem:[%s223 + $0x10] sm:$0xf]
        %v232 = vld [vmem:[%s223 + $0x14] sm:$0xf]
        %v233 = vld [vmem:[%s223 + $0x18] sm:$0xf]
        %v234 = vld [vmem:[%s223 + $0x1c] sm:$0xf]
        %v235 = vld [vmem:[%s223 + $0x20] sm:$0xf]
        %v236 = vld [vmem:[%s223 + $0x24] sm:$0xf]
        %v237 = vld [vmem:[%s223 + $0x28] sm:$0xf]
        %v238 = vld [vmem:[%s223 + $0x2c] sm:$0xf]
        %v239 = vld [vmem:[%s223 + $0x30] sm:$0xf]
        %v240 = vld [vmem:[%s223 + $0x34] sm:$0xf]
        %v241 = vld [vmem:[%s223 + $0x38] sm:$0xf]
        %v242 = vld [vmem:[%s223 + $0x3c] sm:$0xf]
        %v243 = vld [vmem:[%s223 + $0x40] sm:$0xf]
        %v244 = vld [vmem:[%s223 + $0x44] sm:$0xf]
        %v245 = vld [vmem:[%s223 + $0x48] sm:$0xf]
        %v246 = vld [vmem:[%s223 + $0x4c] sm:$0xf]
        %v247 = vld [vmem:[%s223 + $0x50] sm:$0xf]
        %v248 = vld [vmem:[%s223 + $0x54] sm:$0xf]
        %v249 = vld [vmem:[%s223 + $0x58] sm:$0xf]
        %v250 = vld [vmem:[%s223 + $0x5c] sm:$0xf]
        %v251 = vld [vmem:[%s223 + $0x60] sm:$0xf]
        %v252 = vld [vmem:[%s223 + $0x64] sm:$0xf]
        %v253 = vld [vmem:[%s223 + $0x68] sm:$0xf]
        %v254 = vld [vmem:[%s223 + $0x6c] sm:$0xf]
        %v255 = vld [vmem:[%s223 + $0x70] sm:$0xf]
        %v256 = vld [vmem:[%s223 + $0x74] sm:$0xf]
        %v257 = vld [vmem:[%s223 + $0x78] sm:$0xf]
        %v258 = vld [vmem:[%s223 + $0x7c] sm:$0xf]
        %v259 = vld [vmem:[%s1] sm:$0xff]
        %v260 = vld [vmem:[%s1 + $0x8] sm:$0xff]
        %v261 = vld [vmem:[%s1 + $0x10] sm:$0xff]
        %v262 = vld [vmem:[%s1 + $0x18] sm:$0xff]
        %v263 = vld [vmem:[%s1 + $0x20] sm:$0xff]
        %v264 = vld [vmem:[%s1 + $0x28] sm:$0xff]
        %v265 = vld [vmem:[%s1 + $0x30] sm:$0xff]
        %v266 = vld [vmem:[%s1 + $0x38] sm:$0xff]
        %v267 = vld [vmem:[%s1 + $0x40] sm:$0xff]
        %v268 = vld [vmem:[%s1 + $0x48] sm:$0xff]
        %v269 = vld [vmem:[%s1 + $0x50] sm:$0xff]
        %v270 = vld [vmem:[%s1 + $0x58] sm:$0xff]
        %v271 = vld [vmem:[%s1 + $0x60] sm:$0xff]
        %v272 = vld [vmem:[%s1 + $0x68] sm:$0xff]
        %v273 = vld [vmem:[%s1 + $0x70] sm:$0xff]
        %v274 = vld [vmem:[%s1 + $0x78] sm:$0xff]
        %v275 = vld [vmem:[%s2] sm:$0x3]
        %v277 = vlaneseq
        %v278 = vshrl.u32 %v277, 7
        %v279 = vsub.s32 0, %v278
        %v280 = vrot.slane %v275, %v279
        %v281 = vlaneseq
        %v282 = vshrl.u32 %v281, 7
        %v283 = vsub.s32 1, %v282
        %v284 = vrot.slane %v275, %v283
        %v319 = vunpack.c.l.b16 %v227
        %v320 = vunpack.c.l.b16 %v228
        %v321 = vunpack.c.l.b16 %v229
        %v322 = vunpack.c.l.b16 %v230
        %v323 = vunpack.c.l.b16 %v231
        %v324 = vunpack.c.l.b16 %v232
        %v325 = vunpack.c.l.b16 %v233
        %v326 = vunpack.c.l.b16 %v234
        %v327 = vunpack.c.l.b16 %v235
        %v328 = vunpack.c.l.b16 %v236
        %v329 = vunpack.c.l.b16 %v237
        %v330 = vunpack.c.l.b16 %v238
        %v331 = vunpack.c.l.b16 %v239
        %v332 = vunpack.c.l.b16 %v240
        %v333 = vunpack.c.l.b16 %v241
        %v334 = vunpack.c.l.b16 %v242
        %v335 = vunpack.c.l.b16 %v243
        %v336 = vunpack.c.l.b16 %v244
        %v337 = vunpack.c.l.b16 %v245
        %v338 = vunpack.c.l.b16 %v246
        %v339 = vunpack.c.l.b16 %v247
        %v340 = vunpack.c.l.b16 %v248
        %v341 = vunpack.c.l.b16 %v249
        %v342 = vunpack.c.l.b16 %v250
        %v343 = vunpack.c.l.b16 %v251
        %v344 = vunpack.c.l.b16 %v252
        %v345 = vunpack.c.l.b16 %v253
        %v346 = vunpack.c.l.b16 %v254
        %v347 = vunpack.c.l.b16 %v255
        %v348 = vunpack.c.l.b16 %v256
        %v349 = vunpack.c.l.b16 %v257
        %v350 = vunpack.c.l.b16 %v258
        %v351 = vpack.c.b16 %v320, %v319
        %v352 = vpack.c.b16 %v322, %v321
        %v353 = vpack.c.b16 %v324, %v323
        %v354 = vpack.c.b16 %v326, %v325
        %v355 = vpack.c.b16 %v328, %v327
        %v356 = vpack.c.b16 %v330, %v329
        %v357 = vpack.c.b16 %v332, %v331
        %v358 = vpack.c.b16 %v334, %v333
        %v359 = vpack.c.b16 %v336, %v335
        %v360 = vpack.c.b16 %v338, %v337
        %v361 = vpack.c.b16 %v340, %v339
        %v362 = vpack.c.b16 %v342, %v341
        %v363 = vpack.c.b16 %v344, %v343
        %v364 = vpack.c.b16 %v346, %v345
        %v365 = vpack.c.b16 %v348, %v347
        %v366 = vpack.c.b16 %v350, %v349
        %v399 = vunpack.c.l.b16 %v259
        %v400 = vunpack.c.h.b16 %v259
        %v401 = vunpack.c.l.b16 %v260
        %v402 = vunpack.c.h.b16 %v260
        %v403 = vunpack.c.l.b16 %v261
        %v404 = vunpack.c.h.b16 %v261
        %v405 = vunpack.c.l.b16 %v262
        %v406 = vunpack.c.h.b16 %v262
        %v407 = vunpack.c.l.b16 %v263
        %v408 = vunpack.c.h.b16 %v263
        %v409 = vunpack.c.l.b16 %v264
        %v410 = vunpack.c.h.b16 %v264
        %v411 = vunpack.c.l.b16 %v265
        %v412 = vunpack.c.h.b16 %v265
        %v413 = vunpack.c.l.b16 %v266
        %v414 = vunpack.c.h.b16 %v266
        %v415 = vunpack.c.l.b16 %v267
        %v416 = vunpack.c.h.b16 %v267
        %v417 = vunpack.c.l.b16 %v268
        %v418 = vunpack.c.h.b16 %v268
        %v419 = vunpack.c.l.b16 %v269
        %v420 = vunpack.c.h.b16 %v269
        %v421 = vunpack.c.l.b16 %v270
        %v422 = vunpack.c.h.b16 %v270
        %v423 = vunpack.c.l.b16 %v271
        %v424 = vunpack.c.h.b16 %v271
        %v425 = vunpack.c.l.b16 %v272
        %v426 = vunpack.c.h.b16 %v272
        %v427 = vunpack.c.l.b16 %v273
        %v428 = vunpack.c.h.b16 %v273
        %v429 = vunpack.c.l.b16 %v274
        %v430 = vunpack.c.h.b16 %v274
        %v431 = vpack.c.b16 %v401, %v399
        %v432 = vpack.c.b16 %v402, %v400
        %v433 = vpack.c.b16 %v405, %v403
        %v434 = vpack.c.b16 %v406, %v404
        %v435 = vpack.c.b16 %v409, %v407
        %v436 = vpack.c.b16 %v410, %v408
        %v437 = vpack.c.b16 %v413, %v411
        %v438 = vpack.c.b16 %v414, %v412
        %v439 = vpack.c.b16 %v417, %v415
        %v440 = vpack.c.b16 %v418, %v416
        %v441 = vpack.c.b16 %v421, %v419
        %v442 = vpack.c.b16 %v422, %v420
        %v443 = vpack.c.b16 %v425, %v423
        %v444 = vpack.c.b16 %v426, %v424
        %v445 = vpack.c.b16 %v429, %v427
        %v446 = vpack.c.b16 %v430, %v428
        %463 = vmatprep.subr.bf16.mxu0 %v432
        %464 = vmatpush1.bf16.msra.mxu0 %v431
        %465 = vmatprep.subr.bf16.mxu0 %v434
        %466 = vmatpush1.bf16.msra.mxu0 %v433
        %467 = vmatprep.subr.bf16.mxu0 %v436
        %468 = vmatpush1.bf16.msra.mxu0 %v435
        %469 = vmatprep.subr.bf16.mxu0 %v438
        %470 = vmatpush1.bf16.msra.mxu0 %v437
        %471 = vmatprep.subr.bf16.mxu0 %v440
        %472 = vmatpush1.bf16.msra.mxu0 %v439
        %473 = vmatprep.subr.bf16.mxu0 %v442
        %474 = vmatpush1.bf16.msra.mxu0 %v441
        %475 = vmatprep.subr.bf16.mxu0 %v444
        %476 = vmatpush1.bf16.msra.mxu0 %v443
        %477 = vmatprep.subr.bf16.mxu0 %v446
        %478 = vmatpush1.bf16.msra.mxu0 %v445
        %479 = vmatprep.subr.bf16.mxu0 0
        %480 = vmatpush1.bf16.msra.mxu0 0
        %481 = vmatprep.subr.bf16.mxu0 0
        %482 = vmatpush1.bf16.msra.mxu0 0
        %483 = vmatprep.subr.bf16.mxu0 0
        %484 = vmatpush1.bf16.msra.mxu0 0
        %485 = vmatprep.subr.bf16.mxu0 0
        %486 = vmatpush1.bf16.msra.mxu0 0
        %487 = vmatprep.subr.bf16.mxu0 0
        %488 = vmatpush1.bf16.msra.mxu0 0
        %489 = vmatprep.subr.bf16.mxu0 0
        %490 = vmatpush1.bf16.msra.mxu0 0
        %491 = vmatprep.subr.bf16.mxu0 0
        %492 = vmatpush1.bf16.msra.mxu0 0
        %493 = vmatprep.subr.bf16.mxu0 0
        %494 = vmatpush1.bf16.msra.mxu0 0
        %495 = vmatprep.mubr.bf16.mxu0 0
        %496 = vmatmul.mubr.bf16.gmra.mrb[0].mxu0 %v351
        %v497 = vpop.f32.mrb[0].mxu0
        %v498 = vadd.f32 %v280, %v497
        %v499 = vpop.f32.mrb[0].mxu0
        %v500 = vadd.f32 %v284, %v499
        %v501 = vpop.f32.mrb[0].mxu0
        %v502 = vadd.f32 %v280, %v501
        %v503 = vpop.f32.mrb[0].mxu0
        %v504 = vadd.f32 %v284, %v503
        %505 = vmatprep.mubr.bf16.mxu0 0
        %506 = vmatmul.mubr.bf16.gmra.mrb[0].mxu0 %v352
        %v507 = vpop.f32.mrb[0].mxu0
        %v508 = vadd.f32 %v280, %v507
        %v509 = vpop.f32.mrb[0].mxu0
        %v510 = vadd.f32 %v284, %v509
        %v511 = vpop.f32.mrb[0].mxu0
        %v512 = vadd.f32 %v280, %v511
        %v513 = vpop.f32.mrb[0].mxu0
        %v514 = vadd.f32 %v284, %v513
        %515 = vmatprep.mubr.bf16.mxu0 0
        %516 = vmatmul.mubr.bf16.gmra.mrb[0].mxu0 %v353
        %v517 = vpop.f32.mrb[0].mxu0
        %v518 = vadd.f32 %v280, %v517
        %v519 = vpop.f32.mrb[0].mxu0
        %v520 = vadd.f32 %v284, %v519
        %v521 = vpop.f32.mrb[0].mxu0
        %v522 = vadd.f32 %v280, %v521
        %v523 = vpop.f32.mrb[0].mxu0
        %v524 = vadd.f32 %v284, %v523
        %525 = vmatprep.mubr.bf16.mxu0 0
        %526 = vmatmul.mubr.bf16.gmra.mrb[0].mxu0 %v354
        %v527 = vpop.f32.mrb[0].mxu0
        %v528 = vadd.f32 %v280, %v527
        %v529 = vpop.f32.mrb[0].mxu0
        %v530 = vadd.f32 %v284, %v529
        %v531 = vpop.f32.mrb[0].mxu0
        %v532 = vadd.f32 %v280, %v531
        %v533 = vpop.f32.mrb[0].mxu0
        %v534 = vadd.f32 %v284, %v533
        %535 = vmatprep.mubr.bf16.mxu0 0
        %536 = vmatmul.mubr.bf16.gmra.mrb[0].mxu0 %v355
        %v537 = vpop.f32.mrb[0].mxu0
        %v538 = vadd.f32 %v280, %v537
        %v539 = vpop.f32.mrb[0].mxu0
        %v540 = vadd.f32 %v284, %v539
        %v541 = vpop.f32.mrb[0].mxu0
        %v542 = vadd.f32 %v280, %v541
        %v543 = vpop.f32.mrb[0].mxu0
        %v544 = vadd.f32 %v284, %v543
        %545 = vmatprep.mubr.bf16.mxu0 0
        %546 = vmatmul.mubr.bf16.gmra.mrb[0].mxu0 %v356
        %v547 = vpop.f32.mrb[0].mxu0
        %v548 = vadd.f32 %v280, %v547
        %v549 = vpop.f32.mrb[0].mxu0
        %v550 = vadd.f32 %v284, %v549
        %v551 = vpop.f32.mrb[0].mxu0
        %v552 = vadd.f32 %v280, %v551
        %v553 = vpop.f32.mrb[0].mxu0
        %v554 = vadd.f32 %v284, %v553
        %555 = vmatprep.mubr.bf16.mxu0 0
        %556 = vmatmul.mubr.bf16.gmra.mrb[0].mxu0 %v357
        %v557 = vpop.f32.mrb[0].mxu0
        %v558 = vadd.f32 %v280, %v557
        %v559 = vpop.f32.mrb[0].mxu0
        %v560 = vadd.f32 %v284, %v559
        %v561 = vpop.f32.mrb[0].mxu0
        %v562 = vadd.f32 %v280, %v561
        %v563 = vpop.f32.mrb[0].mxu0
        %v564 = vadd.f32 %v284, %v563
        %565 = vmatprep.mubr.bf16.mxu0 0
        %566 = vmatmul.mubr.bf16.gmra.mrb[0].mxu0 %v358
        %v567 = vpop.f32.mrb[0].mxu0
        %v568 = vadd.f32 %v280, %v567
        %v569 = vpop.f32.mrb[0].mxu0
        %v570 = vadd.f32 %v284, %v569
        %v571 = vpop.f32.mrb[0].mxu0
        %v572 = vadd.f32 %v280, %v571
        %v573 = vpop.f32.mrb[0].mxu0
        %v574 = vadd.f32 %v284, %v573
        %575 = vmatprep.mubr.bf16.mxu0 0
        %576 = vmatmul.mubr.bf16.gmra.mrb[0].mxu0 %v359
        %v577 = vpop.f32.mrb[0].mxu0
        %v578 = vadd.f32 %v280, %v577
        %v579 = vpop.f32.mrb[0].mxu0
        %v580 = vadd.f32 %v284, %v579
        %v581 = vpop.f32.mrb[0].mxu0
        %v582 = vadd.f32 %v280, %v581
        %v583 = vpop.f32.mrb[0].mxu0
        %v584 = vadd.f32 %v284, %v583
        %585 = vmatprep.mubr.bf16.mxu0 0
        %586 = vmatmul.mubr.bf16.gmra.mrb[0].mxu0 %v360
        %v587 = vpop.f32.mrb[0].mxu0
        %v588 = vadd.f32 %v280, %v587
        %v589 = vpop.f32.mrb[0].mxu0
        %v590 = vadd.f32 %v284, %v589
        %v591 = vpop.f32.mrb[0].mxu0
        %v592 = vadd.f32 %v280, %v591
        %v593 = vpop.f32.mrb[0].mxu0
        %v594 = vadd.f32 %v284, %v593
        %595 = vmatprep.mubr.bf16.mxu0 0
        %596 = vmatmul.mubr.bf16.gmra.mrb[0].mxu0 %v361
        %v597 = vpop.f32.mrb[0].mxu0
        %v598 = vadd.f32 %v280, %v597
        %v599 = vpop.f32.mrb[0].mxu0
        %v600 = vadd.f32 %v284, %v599
        %v601 = vpop.f32.mrb[0].mxu0
        %v602 = vadd.f32 %v280, %v601
        %v603 = vpop.f32.mrb[0].mxu0
        %v604 = vadd.f32 %v284, %v603
        %605 = vmatprep.mubr.bf16.mxu0 0
        %606 = vmatmul.mubr.bf16.gmra.mrb[0].mxu0 %v362
        %v607 = vpop.f32.mrb[0].mxu0
        %v608 = vadd.f32 %v280, %v607
        %v609 = vpop.f32.mrb[0].mxu0
        %v610 = vadd.f32 %v284, %v609
        %v611 = vpop.f32.mrb[0].mxu0
        %v612 = vadd.f32 %v280, %v611
        %v613 = vpop.f32.mrb[0].mxu0
        %v614 = vadd.f32 %v284, %v613
        %615 = vmatprep.mubr.bf16.mxu0 0
        %616 = vmatmul.mubr.bf16.gmra.mrb[0].mxu0 %v363
        %v617 = vpop.f32.mrb[0].mxu0
        %v618 = vadd.f32 %v280, %v617
        %v619 = vpop.f32.mrb[0].mxu0
        %v620 = vadd.f32 %v284, %v619
        %v621 = vpop.f32.mrb[0].mxu0
        %v622 = vadd.f32 %v280, %v621
        %v623 = vpop.f32.mrb[0].mxu0
        %v624 = vadd.f32 %v284, %v623
        %625 = vmatprep.mubr.bf16.mxu0 0
        %626 = vmatmul.mubr.bf16.gmra.mrb[0].mxu0 %v364
        %v627 = vpop.f32.mrb[0].mxu0
        %v628 = vadd.f32 %v280, %v627
        %v629 = vpop.f32.mrb[0].mxu0
        %v630 = vadd.f32 %v284, %v629
        %v631 = vpop.f32.mrb[0].mxu0
        %v632 = vadd.f32 %v280, %v631
        %v633 = vpop.f32.mrb[0].mxu0
        %v634 = vadd.f32 %v284, %v633
        %635 = vmatprep.mubr.bf16.mxu0 0
        %636 = vmatmul.mubr.bf16.gmra.mrb[0].mxu0 %v365
        %v637 = vpop.f32.mrb[0].mxu0
        %v638 = vadd.f32 %v280, %v637
        %v639 = vpop.f32.mrb[0].mxu0
        %v640 = vadd.f32 %v284, %v639
        %v641 = vpop.f32.mrb[0].mxu0
        %v642 = vadd.f32 %v280, %v641
        %v643 = vpop.f32.mrb[0].mxu0
        %v644 = vadd.f32 %v284, %v643
        %645 = vmatprep.mubr.bf16.mxu0 0
        %646 = vmatmul.mubr.bf16.gmra.mrb[0].mxu0 %v366
        %v647 = vpop.f32.mrb[0].mxu0
        %v648 = vadd.f32 %v280, %v647
        %v649 = vpop.f32.mrb[0].mxu0
        %v650 = vadd.f32 %v284, %v649
        %v651 = vpop.f32.mrb[0].mxu0
        %v652 = vadd.f32 %v280, %v651
        %v653 = vpop.f32.mrb[0].mxu0
        %v654 = vadd.f32 %v284, %v653
        %655 = vdwg.mxu0
        %v656 = vmul.f32 %v498, 0.5
        %v657 = vmul.f32 %v500, 0.5
        %v658 = vmul.f32 %v502, 0.5
        %v659 = vmul.f32 %v504, 0.5
        %v660 = vmul.f32 %v508, 0.5
        %v661 = vmul.f32 %v510, 0.5
        %v662 = vmul.f32 %v512, 0.5
        %v663 = vmul.f32 %v514, 0.5
        %v664 = vmul.f32 %v518, 0.5
        %v665 = vmul.f32 %v520, 0.5
        %v666 = vmul.f32 %v522, 0.5
        %v667 = vmul.f32 %v524, 0.5
        %v668 = vmul.f32 %v528, 0.5
        %v669 = vmul.f32 %v530, 0.5
        %v670 = vmul.f32 %v532, 0.5
        %v671 = vmul.f32 %v534, 0.5
        %v672 = vmul.f32 %v538, 0.5
        %v673 = vmul.f32 %v540, 0.5
        %v674 = vmul.f32 %v542, 0.5
        %v675 = vmul.f32 %v544, 0.5
        %v676 = vmul.f32 %v548, 0.5
        %v677 = vmul.f32 %v550, 0.5
        %v678 = vmul.f32 %v552, 0.5
        %v679 = vmul.f32 %v554, 0.5
        %v680 = vmul.f32 %v558, 0.5
        %v681 = vmul.f32 %v560, 0.5
        %v682 = vmul.f32 %v562, 0.5
        %v683 = vmul.f32 %v564, 0.5
        %v684 = vmul.f32 %v568, 0.5
        %v685 = vmul.f32 %v570, 0.5
        %v686 = vmul.f32 %v572, 0.5
        %v687 = vmul.f32 %v574, 0.5
        %v688 = vmul.f32 %v578, 0.5
        %v689 = vmul.f32 %v580, 0.5
        %v690 = vmul.f32 %v582, 0.5
        %v691 = vmul.f32 %v584, 0.5
        %v692 = vmul.f32 %v588, 0.5
        %v693 = vmul.f32 %v590, 0.5
        %v694 = vmul.f32 %v592, 0.5
        %v695 = vmul.f32 %v594, 0.5
        %v696 = vmul.f32 %v598, 0.5
        %v697 = vmul.f32 %v600, 0.5
        %v698 = vmul.f32 %v602, 0.5
        %v699 = vmul.f32 %v604, 0.5
        %v700 = vmul.f32 %v608, 0.5
        %v701 = vmul.f32 %v610, 0.5
        %v702 = vmul.f32 %v612, 0.5
        %v703 = vmul.f32 %v614, 0.5
        %v704 = vmul.f32 %v618, 0.5
        %v705 = vmul.f32 %v620, 0.5
        %v706 = vmul.f32 %v622, 0.5
        %v707 = vmul.f32 %v624, 0.5
        %v708 = vmul.f32 %v628, 0.5
        %v709 = vmul.f32 %v630, 0.5
        %v710 = vmul.f32 %v632, 0.5
        %v711 = vmul.f32 %v634, 0.5
        %v712 = vmul.f32 %v638, 0.5
        %v713 = vmul.f32 %v640, 0.5
        %v714 = vmul.f32 %v642, 0.5
        %v715 = vmul.f32 %v644, 0.5
        %v716 = vmul.f32 %v648, 0.5
        %v717 = vmul.f32 %v650, 0.5
        %v718 = vmul.f32 %v652, 0.5
        %v719 = vmul.f32 %v654, 0.5
        %v720 = vmul.f32 %v498, %v498
        %v721 = vmul.f32 %v500, %v500
        %v722 = vmul.f32 %v502, %v502
        %v723 = vmul.f32 %v504, %v504
        %v724 = vmul.f32 %v508, %v508
        %v725 = vmul.f32 %v510, %v510
        %v726 = vmul.f32 %v512, %v512
        %v727 = vmul.f32 %v514, %v514
        %v728 = vmul.f32 %v518, %v518
        %v729 = vmul.f32 %v520, %v520
        %v730 = vmul.f32 %v522, %v522
        %v731 = vmul.f32 %v524, %v524
        %v732 = vmul.f32 %v528, %v528
        %v733 = vmul.f32 %v530, %v530
        %v734 = vmul.f32 %v532, %v532
        %v735 = vmul.f32 %v534, %v534
        %v736 = vmul.f32 %v538, %v538
        %v737 = vmul.f32 %v540, %v540
        %v738 = vmul.f32 %v542, %v542
        %v739 = vmul.f32 %v544, %v544
        %v740 = vmul.f32 %v548, %v548
        %v741 = vmul.f32 %v550, %v550
        %v742 = vmul.f32 %v552, %v552
        %v743 = vmul.f32 %v554, %v554
        %v744 = vmul.f32 %v558, %v558
        %v745 = vmul.f32 %v560, %v560
        %v746 = vmul.f32 %v562, %v562
        %v747 = vmul.f32 %v564, %v564
        %v748 = vmul.f32 %v568, %v568
        %v749 = vmul.f32 %v570, %v570
        %v750 = vmul.f32 %v572, %v572
        %v751 = vmul.f32 %v574, %v574
        %v752 = vmul.f32 %v578, %v578
        %v753 = vmul.f32 %v580, %v580
        %v754 = vmul.f32 %v582, %v582
        %v755 = vmul.f32 %v584, %v584
        %v756 = vmul.f32 %v588, %v588
        %v757 = vmul.f32 %v590, %v590
        %v758 = vmul.f32 %v592, %v592
        %v759 = vmul.f32 %v594, %v594
        %v760 = vmul.f32 %v598, %v598
        %v761 = vmul.f32 %v600, %v600
        %v762 = vmul.f32 %v602, %v602
        %v763 = vmul.f32 %v604, %v604
        %v764 = vmul.f32 %v608, %v608
        %v765 = vmul.f32 %v610, %v610
        %v766 = vmul.f32 %v612, %v612
        %v767 = vmul.f32 %v614, %v614
        %v768 = vmul.f32 %v618, %v618
        %v769 = vmul.f32 %v620, %v620
        %v770 = vmul.f32 %v622, %v622
        %v771 = vmul.f32 %v624, %v624
        %v772 = vmul.f32 %v628, %v628
        %v773 = vmul.f32 %v630, %v630
        %v774 = vmul.f32 %v632, %v632
        %v775 = vmul.f32 %v634, %v634
        %v776 = vmul.f32 %v638, %v638
        %v777 = vmul.f32 %v640, %v640
        %v778 = vmul.f32 %v642, %v642
        %v779 = vmul.f32 %v644, %v644
        %v780 = vmul.f32 %v648, %v648
        %v781 = vmul.f32 %v650, %v650
        %v782 = vmul.f32 %v652, %v652
        %v783 = vmul.f32 %v654, %v654
        %v784 = vmul.f32 %v720, 0.035677407
        %v785 = vmul.f32 %v721, 0.035677407
        %v786 = vmul.f32 %v722, 0.035677407
        %v787 = vmul.f32 %v723, 0.035677407
        %v788 = vmul.f32 %v724, 0.035677407
        %v789 = vmul.f32 %v725, 0.035677407
        %v790 = vmul.f32 %v726, 0.035677407
        %v791 = vmul.f32 %v727, 0.035677407
        %v792 = vmul.f32 %v728, 0.035677407
        %v793 = vmul.f32 %v729, 0.035677407
        %v794 = vmul.f32 %v730, 0.035677407
        %v795 = vmul.f32 %v731, 0.035677407
        %v796 = vmul.f32 %v732, 0.035677407
        %v797 = vmul.f32 %v733, 0.035677407
        %v798 = vmul.f32 %v734, 0.035677407
        %v799 = vmul.f32 %v735, 0.035677407
        %v800 = vmul.f32 %v736, 0.035677407
        %v801 = vmul.f32 %v737, 0.035677407
        %v802 = vmul.f32 %v738, 0.035677407
        %v803 = vmul.f32 %v739, 0.035677407
        %v804 = vmul.f32 %v740, 0.035677407
        %v805 = vmul.f32 %v741, 0.035677407
        %v806 = vmul.f32 %v742, 0.035677407
        %v807 = vmul.f32 %v743, 0.035677407
        %v808 = vmul.f32 %v744, 0.035677407
        %v809 = vmul.f32 %v745, 0.035677407
        %v810 = vmul.f32 %v746, 0.035677407
        %v811 = vmul.f32 %v747, 0.035677407
        %v812 = vmul.f32 %v748, 0.035677407
        %v813 = vmul.f32 %v749, 0.035677407
        %v814 = vmul.f32 %v750, 0.035677407
        %v815 = vmul.f32 %v751, 0.035677407
        %v816 = vmul.f32 %v752, 0.035677407
        %v817 = vmul.f32 %v753, 0.035677407
        %v818 = vmul.f32 %v754, 0.035677407
        %v819 = vmul.f32 %v755, 0.035677407
        %v820 = vmul.f32 %v756, 0.035677407
        %v821 = vmul.f32 %v757, 0.035677407
        %v822 = vmul.f32 %v758, 0.035677407
        %v823 = vmul.f32 %v759, 0.035677407
        %v824 = vmul.f32 %v760, 0.035677407
        %v825 = vmul.f32 %v761, 0.035677407
        %v826 = vmul.f32 %v762, 0.035677407
        %v827 = vmul.f32 %v763, 0.035677407
        %v828 = vmul.f32 %v764, 0.035677407
        %v829 = vmul.f32 %v765, 0.035677407
        %v830 = vmul.f32 %v766, 0.035677407
        %v831 = vmul.f32 %v767, 0.035677407
        %v832 = vmul.f32 %v768, 0.035677407
        %v833 = vmul.f32 %v769, 0.035677407
        %v834 = vmul.f32 %v770, 0.035677407
        %v835 = vmul.f32 %v771, 0.035677407
        %v836 = vmul.f32 %v772, 0.035677407
        %v837 = vmul.f32 %v773, 0.035677407
        %v838 = vmul.f32 %v774, 0.035677407
        %v839 = vmul.f32 %v775, 0.035677407
        %v840 = vmul.f32 %v776, 0.035677407
        %v841 = vmul.f32 %v777, 0.035677407
        %v842 = vmul.f32 %v778, 0.035677407
        %v843 = vmul.f32 %v779, 0.035677407
        %v844 = vmul.f32 %v780, 0.035677407
        %v845 = vmul.f32 %v781, 0.035677407
        %v846 = vmul.f32 %v782, 0.035677407
        %v847 = vmul.f32 %v783, 0.035677407
        %v848 = vadd.f32 %v784, 0.7978846
        %v849 = vadd.f32 %v785, 0.7978846
        %v850 = vadd.f32 %v786, 0.7978846
        %v851 = vadd.f32 %v787, 0.7978846
        %v852 = vadd.f32 %v788, 0.7978846
        %v853 = vadd.f32 %v789, 0.7978846
        %v854 = vadd.f32 %v790, 0.7978846
        %v855 = vadd.f32 %v791, 0.7978846
        %v856 = vadd.f32 %v792, 0.7978846
        %v857 = vadd.f32 %v793, 0.7978846
        %v858 = vadd.f32 %v794, 0.7978846
        %v859 = vadd.f32 %v795, 0.7978846
        %v860 = vadd.f32 %v796, 0.7978846
        %v861 = vadd.f32 %v797, 0.7978846
        %v862 = vadd.f32 %v798, 0.7978846
        %v863 = vadd.f32 %v799, 0.7978846
        %v864 = vadd.f32 %v800, 0.7978846
        %v865 = vadd.f32 %v801, 0.7978846
        %v866 = vadd.f32 %v802, 0.7978846
        %v867 = vadd.f32 %v803, 0.7978846
        %v868 = vadd.f32 %v804, 0.7978846
        %v869 = vadd.f32 %v805, 0.7978846
        %v870 = vadd.f32 %v806, 0.7978846
        %v871 = vadd.f32 %v807, 0.7978846
        %v872 = vadd.f32 %v808, 0.7978846
        %v873 = vadd.f32 %v809, 0.7978846
        %v874 = vadd.f32 %v810, 0.7978846
        %v875 = vadd.f32 %v811, 0.7978846
        %v876 = vadd.f32 %v812, 0.7978846
        %v877 = vadd.f32 %v813, 0.7978846
        %v878 = vadd.f32 %v814, 0.7978846
        %v879 = vadd.f32 %v815, 0.7978846
        %v880 = vadd.f32 %v816, 0.7978846
        %v881 = vadd.f32 %v817, 0.7978846
        %v882 = vadd.f32 %v818, 0.7978846
        %v883 = vadd.f32 %v819, 0.7978846
        %v884 = vadd.f32 %v820, 0.7978846
        %v885 = vadd.f32 %v821, 0.7978846
        %v886 = vadd.f32 %v822, 0.7978846
        %v887 = vadd.f32 %v823, 0.7978846
        %v888 = vadd.f32 %v824, 0.7978846
        %v889 = vadd.f32 %v825, 0.7978846
        %v890 = vadd.f32 %v826, 0.7978846
        %v891 = vadd.f32 %v827, 0.7978846
        %v892 = vadd.f32 %v828, 0.7978846
        %v893 = vadd.f32 %v829, 0.7978846
        %v894 = vadd.f32 %v830, 0.7978846
        %v895 = vadd.f32 %v831, 0.7978846
        %v896 = vadd.f32 %v832, 0.7978846
        %v897 = vadd.f32 %v833, 0.7978846
        %v898 = vadd.f32 %v834, 0.7978846
        %v899 = vadd.f32 %v835, 0.7978846
        %v900 = vadd.f32 %v836, 0.7978846
        %v901 = vadd.f32 %v837, 0.7978846
        %v902 = vadd.f32 %v838, 0.7978846
        %v903 = vadd.f32 %v839, 0.7978846
        %v904 = vadd.f32 %v840, 0.7978846
        %v905 = vadd.f32 %v841, 0.7978846
        %v906 = vadd.f32 %v842, 0.7978846
        %v907 = vadd.f32 %v843, 0.7978846
        %v908 = vadd.f32 %v844, 0.7978846
        %v909 = vadd.f32 %v845, 0.7978846
        %v910 = vadd.f32 %v846, 0.7978846
        %v911 = vadd.f32 %v847, 0.7978846
        %v912 = vmul.f32 %v498, %v848
        %v913 = vmul.f32 %v500, %v849
        %v914 = vmul.f32 %v502, %v850
        %v915 = vmul.f32 %v504, %v851
        %v916 = vmul.f32 %v508, %v852
        %v917 = vmul.f32 %v510, %v853
        %v918 = vmul.f32 %v512, %v854
        %v919 = vmul.f32 %v514, %v855
        %v920 = vmul.f32 %v518, %v856
        %v921 = vmul.f32 %v520, %v857
        %v922 = vmul.f32 %v522, %v858
        %v923 = vmul.f32 %v524, %v859
        %v924 = vmul.f32 %v528, %v860
        %v925 = vmul.f32 %v530, %v861
        %v926 = vmul.f32 %v532, %v862
        %v927 = vmul.f32 %v534, %v863
        %v928 = vmul.f32 %v538, %v864
        %v929 = vmul.f32 %v540, %v865
        %v930 = vmul.f32 %v542, %v866
        %v931 = vmul.f32 %v544, %v867
        %v932 = vmul.f32 %v548, %v868
        %v933 = vmul.f32 %v550, %v869
        %v934 = vmul.f32 %v552, %v870
        %v935 = vmul.f32 %v554, %v871
        %v936 = vmul.f32 %v558, %v872
        %v937 = vmul.f32 %v560, %v873
        %v938 = vmul.f32 %v562, %v874
        %v939 = vmul.f32 %v564, %v875
        %v940 = vmul.f32 %v568, %v876
        %v941 = vmul.f32 %v570, %v877
        %v942 = vmul.f32 %v572, %v878
        %v943 = vmul.f32 %v574, %v879
        %v944 = vmul.f32 %v578, %v880
        %v945 = vmul.f32 %v580, %v881
        %v946 = vmul.f32 %v582, %v882
        %v947 = vmul.f32 %v584, %v883
        %v948 = vmul.f32 %v588, %v884
        %v949 = vmul.f32 %v590, %v885
        %v950 = vmul.f32 %v592, %v886
        %v951 = vmul.f32 %v594, %v887
        %v952 = vmul.f32 %v598, %v888
        %v953 = vmul.f32 %v600, %v889
        %v954 = vmul.f32 %v602, %v890
        %v955 = vmul.f32 %v604, %v891
        %v956 = vmul.f32 %v608, %v892
        %v957 = vmul.f32 %v610, %v893
        %v958 = vmul.f32 %v612, %v894
        %v959 = vmul.f32 %v614, %v895
        %v960 = vmul.f32 %v618, %v896
        %v961 = vmul.f32 %v620, %v897
        %v962 = vmul.f32 %v622, %v898
        %v963 = vmul.f32 %v624, %v899
        %v964 = vmul.f32 %v628, %v900
        %v965 = vmul.f32 %v630, %v901
        %v966 = vmul.f32 %v632, %v902
        %v967 = vmul.f32 %v634, %v903
        %v968 = vmul.f32 %v638, %v904
        %v969 = vmul.f32 %v640, %v905
        %v970 = vmul.f32 %v642, %v906
        %v971 = vmul.f32 %v644, %v907
        %v972 = vmul.f32 %v648, %v908
        %v973 = vmul.f32 %v650, %v909
        %v974 = vmul.f32 %v652, %v910
        %v975 = vmul.f32 %v654, %v911
        %v976 = vtanh.pop %v912
        %v977 = vtanh.pop %v913
        %v978 = vtanh.pop %v914
        %v979 = vtanh.pop %v915
        %v980 = vtanh.pop %v916
        %v981 = vtanh.pop %v917
        %v982 = vtanh.pop %v918
        %v983 = vtanh.pop %v919
        %v984 = vtanh.pop %v920
        %v985 = vtanh.pop %v921
        %v986 = vtanh.pop %v922
        %v987 = vtanh.pop %v923
        %v988 = vtanh.pop %v924
        %v989 = vtanh.pop %v925
        %v990 = vtanh.pop %v926
        %v991 = vtanh.pop %v927
        %v992 = vtanh.pop %v928
        %v993 = vtanh.pop %v929
        %v994 = vtanh.pop %v930
        %v995 = vtanh.pop %v931
        %v996 = vtanh.pop %v932
        %v997 = vtanh.pop %v933
        %v998 = vtanh.pop %v934
        %v999 = vtanh.pop %v935
        %v1000 = vtanh.pop %v936
        %v1001 = vtanh.pop %v937
        %v1002 = vtanh.pop %v938
        %v1003 = vtanh.pop %v939
        %v1004 = vtanh.pop %v940
        %v1005 = vtanh.pop %v941
        %v1006 = vtanh.pop %v942
        %v1007 = vtanh.pop %v943
        %v1008 = vtanh.pop %v944
        %v1009 = vtanh.pop %v945
        %v1010 = vtanh.pop %v946
        %v1011 = vtanh.pop %v947
        %v1012 = vtanh.pop %v948
        %v1013 = vtanh.pop %v949
        %v1014 = vtanh.pop %v950
        %v1015 = vtanh.pop %v951
        %v1016 = vtanh.pop %v952
        %v1017 = vtanh.pop %v953
        %v1018 = vtanh.pop %v954
        %v1019 = vtanh.pop %v955
        %v1020 = vtanh.pop %v956
        %v1021 = vtanh.pop %v957
        %v1022 = vtanh.pop %v958
        %v1023 = vtanh.pop %v959
        %v1024 = vtanh.pop %v960
        %v1025 = vtanh.pop %v961
        %v1026 = vtanh.pop %v962
        %v1027 = vtanh.pop %v963
        %v1028 = vtanh.pop %v964
        %v1029 = vtanh.pop %v965
        %v1030 = vtanh.pop %v966
        %v1031 = vtanh.pop %v967
        %v1032 = vtanh.pop %v968
        %v1033 = vtanh.pop %v969
        %v1034 = vtanh.pop %v970
        %v1035 = vtanh.pop %v971
        %v1036 = vtanh.pop %v972
        %v1037 = vtanh.pop %v973
        %v1038 = vtanh.pop %v974
        %v1039 = vtanh.pop %v975
        %v1040 = vadd.f32 %v976, 1.0
        %v1041 = vadd.f32 %v977, 1.0
        %v1042 = vadd.f32 %v978, 1.0
        %v1043 = vadd.f32 %v979, 1.0
        %v1044 = vadd.f32 %v980, 1.0
        %v1045 = vadd.f32 %v981, 1.0
        %v1046 = vadd.f32 %v982, 1.0
        %v1047 = vadd.f32 %v983, 1.0
        %v1048 = vadd.f32 %v984, 1.0
        %v1049 = vadd.f32 %v985, 1.0
        %v1050 = vadd.f32 %v986, 1.0
        %v1051 = vadd.f32 %v987, 1.0
        %v1052 = vadd.f32 %v988, 1.0
        %v1053 = vadd.f32 %v989, 1.0
        %v1054 = vadd.f32 %v990, 1.0
        %v1055 = vadd.f32 %v991, 1.0
        %v1056 = vadd.f32 %v992, 1.0
        %v1057 = vadd.f32 %v993, 1.0
        %v1058 = vadd.f32 %v994, 1.0
        %v1059 = vadd.f32 %v995, 1.0
        %v1060 = vadd.f32 %v996, 1.0
        %v1061 = vadd.f32 %v997, 1.0
        %v1062 = vadd.f32 %v998, 1.0
        %v1063 = vadd.f32 %v999, 1.0
        %v1064 = vadd.f32 %v1000, 1.0
        %v1065 = vadd.f32 %v1001, 1.0
        %v1066 = vadd.f32 %v1002, 1.0
        %v1067 = vadd.f32 %v1003, 1.0
        %v1068 = vadd.f32 %v1004, 1.0
        %v1069 = vadd.f32 %v1005, 1.0
        %v1070 = vadd.f32 %v1006, 1.0
        %v1071 = vadd.f32 %v1007, 1.0
        %v1072 = vadd.f32 %v1008, 1.0
        %v1073 = vadd.f32 %v1009, 1.0
        %v1074 = vadd.f32 %v1010, 1.0
        %v1075 = vadd.f32 %v1011, 1.0
        %v1076 = vadd.f32 %v1012, 1.0
        %v1077 = vadd.f32 %v1013, 1.0
        %v1078 = vadd.f32 %v1014, 1.0
        %v1079 = vadd.f32 %v1015, 1.0
        %v1080 = vadd.f32 %v1016, 1.0
        %v1081 = vadd.f32 %v1017, 1.0
        %v1082 = vadd.f32 %v1018, 1.0
        %v1083 = vadd.f32 %v1019, 1.0
        %v1084 = vadd.f32 %v1020, 1.0
        %v1085 = vadd.f32 %v1021, 1.0
        %v1086 = vadd.f32 %v1022, 1.0
        %v1087 = vadd.f32 %v1023, 1.0
        %v1088 = vadd.f32 %v1024, 1.0
        %v1089 = vadd.f32 %v1025, 1.0
        %v1090 = vadd.f32 %v1026, 1.0
        %v1091 = vadd.f32 %v1027, 1.0
        %v1092 = vadd.f32 %v1028, 1.0
        %v1093 = vadd.f32 %v1029, 1.0
        %v1094 = vadd.f32 %v1030, 1.0
        %v1095 = vadd.f32 %v1031, 1.0
        %v1096 = vadd.f32 %v1032, 1.0
        %v1097 = vadd.f32 %v1033, 1.0
        %v1098 = vadd.f32 %v1034, 1.0
        %v1099 = vadd.f32 %v1035, 1.0
        %v1100 = vadd.f32 %v1036, 1.0
        %v1101 = vadd.f32 %v1037, 1.0
        %v1102 = vadd.f32 %v1038, 1.0
        %v1103 = vadd.f32 %v1039, 1.0
        %v1104 = vmul.f32 %v656, %v1040
        %v1105 = vmul.f32 %v657, %v1041
        %v1106 = vmul.f32 %v658, %v1042
        %v1107 = vmul.f32 %v659, %v1043
        %v1108 = vmul.f32 %v660, %v1044
        %v1109 = vmul.f32 %v661, %v1045
        %v1110 = vmul.f32 %v662, %v1046
        %v1111 = vmul.f32 %v663, %v1047
        %v1112 = vmul.f32 %v664, %v1048
        %v1113 = vmul.f32 %v665, %v1049
        %v1114 = vmul.f32 %v666, %v1050
        %v1115 = vmul.f32 %v667, %v1051
        %v1116 = vmul.f32 %v668, %v1052
        %v1117 = vmul.f32 %v669, %v1053
        %v1118 = vmul.f32 %v670, %v1054
        %v1119 = vmul.f32 %v671, %v1055
        %v1120 = vmul.f32 %v672, %v1056
        %v1121 = vmul.f32 %v673, %v1057
        %v1122 = vmul.f32 %v674, %v1058
        %v1123 = vmul.f32 %v675, %v1059
        %v1124 = vmul.f32 %v676, %v1060
        %v1125 = vmul.f32 %v677, %v1061
        %v1126 = vmul.f32 %v678, %v1062
        %v1127 = vmul.f32 %v679, %v1063
        %v1128 = vmul.f32 %v680, %v1064
        %v1129 = vmul.f32 %v681, %v1065
        %v1130 = vmul.f32 %v682, %v1066
        %v1131 = vmul.f32 %v683, %v1067
        %v1132 = vmul.f32 %v684, %v1068
        %v1133 = vmul.f32 %v685, %v1069
        %v1134 = vmul.f32 %v686, %v1070
        %v1135 = vmul.f32 %v687, %v1071
        %v1136 = vmul.f32 %v688, %v1072
        %v1137 = vmul.f32 %v689, %v1073
        %v1138 = vmul.f32 %v690, %v1074
        %v1139 = vmul.f32 %v691, %v1075
        %v1140 = vmul.f32 %v692, %v1076
        %v1141 = vmul.f32 %v693, %v1077
        %v1142 = vmul.f32 %v694, %v1078
        %v1143 = vmul.f32 %v695, %v1079
        %v1144 = vmul.f32 %v696, %v1080
        %v1145 = vmul.f32 %v697, %v1081
        %v1146 = vmul.f32 %v698, %v1082
        %v1147 = vmul.f32 %v699, %v1083
        %v1148 = vmul.f32 %v700, %v1084
        %v1149 = vmul.f32 %v701, %v1085
        %v1150 = vmul.f32 %v702, %v1086
        %v1151 = vmul.f32 %v703, %v1087
        %v1152 = vmul.f32 %v704, %v1088
        %v1153 = vmul.f32 %v705, %v1089
        %v1154 = vmul.f32 %v706, %v1090
        %v1155 = vmul.f32 %v707, %v1091
        %v1156 = vmul.f32 %v708, %v1092
        %v1157 = vmul.f32 %v709, %v1093
        %v1158 = vmul.f32 %v710, %v1094
        %v1159 = vmul.f32 %v711, %v1095
        %v1160 = vmul.f32 %v712, %v1096
        %v1161 = vmul.f32 %v713, %v1097
        %v1162 = vmul.f32 %v714, %v1098
        %v1163 = vmul.f32 %v715, %v1099
        %v1164 = vmul.f32 %v716, %v1100
        %v1165 = vmul.f32 %v717, %v1101
        %v1166 = vmul.f32 %v718, %v1102
        %v1167 = vmul.f32 %v719, %v1103
        %v1168 = vpack.c.bf16 %v1106, %v1104
        %v1169 = vpack.c.bf16 %v1107, %v1105
        %v1170 = vpack.c.bf16 %v1110, %v1108
        %v1171 = vpack.c.bf16 %v1111, %v1109
        %v1172 = vpack.c.bf16 %v1114, %v1112
        %v1173 = vpack.c.bf16 %v1115, %v1113
        %v1174 = vpack.c.bf16 %v1118, %v1116
        %v1175 = vpack.c.bf16 %v1119, %v1117
        %v1176 = vpack.c.bf16 %v1122, %v1120
        %v1177 = vpack.c.bf16 %v1123, %v1121
        %v1178 = vpack.c.bf16 %v1126, %v1124
        %v1179 = vpack.c.bf16 %v1127, %v1125
        %v1180 = vpack.c.bf16 %v1130, %v1128
        %v1181 = vpack.c.bf16 %v1131, %v1129
        %v1182 = vpack.c.bf16 %v1134, %v1132
        %v1183 = vpack.c.bf16 %v1135, %v1133
        %v1184 = vpack.c.bf16 %v1138, %v1136
        %v1185 = vpack.c.bf16 %v1139, %v1137
        %v1186 = vpack.c.bf16 %v1142, %v1140
        %v1187 = vpack.c.bf16 %v1143, %v1141
        %v1188 = vpack.c.bf16 %v1146, %v1144
        %v1189 = vpack.c.bf16 %v1147, %v1145
        %v1190 = vpack.c.bf16 %v1150, %v1148
        %v1191 = vpack.c.bf16 %v1151, %v1149
        %v1192 = vpack.c.bf16 %v1154, %v1152
        %v1193 = vpack.c.bf16 %v1155, %v1153
        %v1194 = vpack.c.bf16 %v1158, %v1156
        %v1195 = vpack.c.bf16 %v1159, %v1157
        %v1196 = vpack.c.bf16 %v1162, %v1160
        %v1197 = vpack.c.bf16 %v1163, %v1161
        %v1198 = vpack.c.bf16 %v1166, %v1164
        %v1199 = vpack.c.bf16 %v1167, %v1165
        %v1200 = vld [vmem:[%s3] sm:$0xf]
        %v1201 = vld [vmem:[%s3 + $0x4] sm:$0xf]
        %v1202 = vld [vmem:[%s3 + $0x8] sm:$0xf]
        %v1203 = vld [vmem:[%s3 + $0xc] sm:$0xf]
        %v1204 = vld [vmem:[%s3 + $0x10] sm:$0xf]
        %v1205 = vld [vmem:[%s3 + $0x14] sm:$0xf]
        %v1206 = vld [vmem:[%s3 + $0x18] sm:$0xf]
        %v1207 = vld [vmem:[%s3 + $0x1c] sm:$0xf]
        %v1208 = vld [vmem:[%s3 + $0x20] sm:$0xf]
        %v1209 = vld [vmem:[%s3 + $0x24] sm:$0xf]
        %v1210 = vld [vmem:[%s3 + $0x28] sm:$0xf]
        %v1211 = vld [vmem:[%s3 + $0x2c] sm:$0xf]
        %v1212 = vld [vmem:[%s3 + $0x30] sm:$0xf]
        %v1213 = vld [vmem:[%s3 + $0x34] sm:$0xf]
        %v1214 = vld [vmem:[%s3 + $0x38] sm:$0xf]
        %v1215 = vld [vmem:[%s3 + $0x3c] sm:$0xf]
        %v1216 = vld [vmem:[%s3 + $0x40] sm:$0xf]
        %v1217 = vld [vmem:[%s3 + $0x44] sm:$0xf]
        %v1218 = vld [vmem:[%s3 + $0x48] sm:$0xf]
        %v1219 = vld [vmem:[%s3 + $0x4c] sm:$0xf]
        %v1220 = vld [vmem:[%s3 + $0x50] sm:$0xf]
        %v1221 = vld [vmem:[%s3 + $0x54] sm:$0xf]
        %v1222 = vld [vmem:[%s3 + $0x58] sm:$0xf]
        %v1223 = vld [vmem:[%s3 + $0x5c] sm:$0xf]
        %v1224 = vld [vmem:[%s3 + $0x60] sm:$0xf]
        %v1225 = vld [vmem:[%s3 + $0x64] sm:$0xf]
        %v1226 = vld [vmem:[%s3 + $0x68] sm:$0xf]
        %v1227 = vld [vmem:[%s3 + $0x6c] sm:$0xf]
        %v1228 = vld [vmem:[%s3 + $0x70] sm:$0xf]
        %v1229 = vld [vmem:[%s3 + $0x74] sm:$0xf]
        %v1230 = vld [vmem:[%s3 + $0x78] sm:$0xf]
        %v1231 = vld [vmem:[%s3 + $0x7c] sm:$0xf]
        %v1232 = vld [vmem:[%s4] sm:$0x1]
        %v1234 = vlaneseq
        %v1235 = vshrl.u32 %v1234, 7
        %v1236 = vsub.s32 0, %v1235
        %v1237 = vrot.slane %v1232, %v1236
        %v1271 = vunpack.c.l.b16 %v1200
        %v1272 = vunpack.c.l.b16 %v1201
        %v1273 = vunpack.c.l.b16 %v1202
        %v1274 = vunpack.c.l.b16 %v1203
        %v1275 = vunpack.c.l.b16 %v1204
        %v1276 = vunpack.c.l.b16 %v1205
        %v1277 = vunpack.c.l.b16 %v1206
        %v1278 = vunpack.c.l.b16 %v1207
        %v1279 = vunpack.c.l.b16 %v1208
        %v1280 = vunpack.c.l.b16 %v1209
        %v1281 = vunpack.c.l.b16 %v1210
        %v1282 = vunpack.c.l.b16 %v1211
        %v1283 = vunpack.c.l.b16 %v1212
        %v1284 = vunpack.c.l.b16 %v1213
        %v1285 = vunpack.c.l.b16 %v1214
        %v1286 = vunpack.c.l.b16 %v1215
        %v1287 = vunpack.c.l.b16 %v1216
        %v1288 = vunpack.c.l.b16 %v1217
        %v1289 = vunpack.c.l.b16 %v1218
        %v1290 = vunpack.c.l.b16 %v1219
        %v1291 = vunpack.c.l.b16 %v1220
        %v1292 = vunpack.c.l.b16 %v1221
        %v1293 = vunpack.c.l.b16 %v1222
        %v1294 = vunpack.c.l.b16 %v1223
        %v1295 = vunpack.c.l.b16 %v1224
        %v1296 = vunpack.c.l.b16 %v1225
        %v1297 = vunpack.c.l.b16 %v1226
        %v1298 = vunpack.c.l.b16 %v1227
        %v1299 = vunpack.c.l.b16 %v1228
        %v1300 = vunpack.c.l.b16 %v1229
        %v1301 = vunpack.c.l.b16 %v1230
        %v1302 = vunpack.c.l.b16 %v1231
        %v1303 = vpack.c.b16 %v1272, %v1271
        %v1304 = vpack.c.b16 %v1274, %v1273
        %v1305 = vpack.c.b16 %v1276, %v1275
        %v1306 = vpack.c.b16 %v1278, %v1277
        %v1307 = vpack.c.b16 %v1280, %v1279
        %v1308 = vpack.c.b16 %v1282, %v1281
        %v1309 = vpack.c.b16 %v1284, %v1283
        %v1310 = vpack.c.b16 %v1286, %v1285
        %v1311 = vpack.c.b16 %v1288, %v1287
        %v1312 = vpack.c.b16 %v1290, %v1289
        %v1313 = vpack.c.b16 %v1292, %v1291
        %v1314 = vpack.c.b16 %v1294, %v1293
        %v1315 = vpack.c.b16 %v1296, %v1295
        %v1316 = vpack.c.b16 %v1298, %v1297
        %v1317 = vpack.c.b16 %v1300, %v1299
        %v1318 = vpack.c.b16 %v1302, %v1301
        %1335 = vmatprep.subr.bf16.mxu0 0
        %1336 = vmatpush1.bf16.msra.mxu0 %v1303
        %1337 = vmatprep.subr.bf16.mxu0 0
        %1338 = vmatpush1.bf16.msra.mxu0 %v1304
        %1339 = vmatprep.subr.bf16.mxu0 0
        %1340 = vmatpush1.bf16.msra.mxu0 %v1305
        %1341 = vmatprep.subr.bf16.mxu0 0
        %1342 = vmatpush1.bf16.msra.mxu0 %v1306
        %1343 = vmatprep.subr.bf16.mxu0 0
        %1344 = vmatpush1.bf16.msra.mxu0 %v1307
        %1345 = vmatprep.subr.bf16.mxu0 0
        %1346 = vmatpush1.bf16.msra.mxu0 %v1308
        %1347 = vmatprep.subr.bf16.mxu0 0
        %1348 = vmatpush1.bf16.msra.mxu0 %v1309
        %1349 = vmatprep.subr.bf16.mxu0 0
        %1350 = vmatpush1.bf16.msra.mxu0 %v1310
        %1351 = vmatprep.subr.bf16.mxu0 0
        %1352 = vmatpush1.bf16.msra.mxu0 %v1311
        %1353 = vmatprep.subr.bf16.mxu0 0
        %1354 = vmatpush1.bf16.msra.mxu0 %v1312
        %1355 = vmatprep.subr.bf16.mxu0 0
        %1356 = vmatpush1.bf16.msra.mxu0 %v1313
        %1357 = vmatprep.subr.bf16.mxu0 0
        %1358 = vmatpush1.bf16.msra.mxu0 %v1314
        %1359 = vmatprep.subr.bf16.mxu0 0
        %1360 = vmatpush1.bf16.msra.mxu0 %v1315
        %1361 = vmatprep.subr.bf16.mxu0 0
        %1362 = vmatpush1.bf16.msra.mxu0 %v1316
        %1363 = vmatprep.subr.bf16.mxu0 0
        %1364 = vmatpush1.bf16.msra.mxu0 %v1317
        %1365 = vmatprep.subr.bf16.mxu0 0
        %1366 = vmatpush1.bf16.msra.mxu0 %v1318
        %1367 = vmatprep.mubr.bf16.mxu0 %v1169
        %1368 = vmatmul.mubr.bf16.gmra.mrb[0].mxu0 %v1168
        %v1369 = vpop.f32.mrb[0].mxu0
        %v1370 = vadd.f32 %v1237, %v1369
        %v1371 = vpop.f32.mrb[0].mxu0
        %v1372 = vpop.f32.mrb[0].mxu0
        %v1373 = vadd.f32 %v1237, %v1372
        %v1374 = vpop.f32.mrb[0].mxu0
        %1375 = vmatprep.mubr.bf16.mxu0 %v1171
        %1376 = vmatmul.mubr.bf16.gmra.mrb[0].mxu0 %v1170
        %v1377 = vpop.f32.mrb[0].mxu0
        %v1378 = vadd.f32 %v1237, %v1377
        %v1379 = vpop.f32.mrb[0].mxu0
        %v1380 = vpop.f32.mrb[0].mxu0
        %v1381 = vadd.f32 %v1237, %v1380
        %v1382 = vpop.f32.mrb[0].mxu0
        %1383 = vmatprep.mubr.bf16.mxu0 %v1173
        %1384 = vmatmul.mubr.bf16.gmra.mrb[0].mxu0 %v1172
        %v1385 = vpop.f32.mrb[0].mxu0
        %v1386 = vadd.f32 %v1237, %v1385
        %v1387 = vpop.f32.mrb[0].mxu0
        %v1388 = vpop.f32.mrb[0].mxu0
        %v1389 = vadd.f32 %v1237, %v1388
        %v1390 = vpop.f32.mrb[0].mxu0
        %1391 = vmatprep.mubr.bf16.mxu0 %v1175
        %1392 = vmatmul.mubr.bf16.gmra.mrb[0].mxu0 %v1174
        %v1393 = vpop.f32.mrb[0].mxu0
        %v1394 = vadd.f32 %v1237, %v1393
        %v1395 = vpop.f32.mrb[0].mxu0
        %v1396 = vpop.f32.mrb[0].mxu0
        %v1397 = vadd.f32 %v1237, %v1396
        %v1398 = vpop.f32.mrb[0].mxu0
        %1399 = vmatprep.mubr.bf16.mxu0 %v1177
        %1400 = vmatmul.mubr.bf16.gmra.mrb[0].mxu0 %v1176
        %v1401 = vpop.f32.mrb[0].mxu0
        %v1402 = vadd.f32 %v1237, %v1401
        %v1403 = vpop.f32.mrb[0].mxu0
        %v1404 = vpop.f32.mrb[0].mxu0
        %v1405 = vadd.f32 %v1237, %v1404
        %v1406 = vpop.f32.mrb[0].mxu0
        %1407 = vmatprep.mubr.bf16.mxu0 %v1179
        %1408 = vmatmul.mubr.bf16.gmra.mrb[0].mxu0 %v1178
        %v1409 = vpop.f32.mrb[0].mxu0
        %v1410 = vadd.f32 %v1237, %v1409
        %v1411 = vpop.f32.mrb[0].mxu0
        %v1412 = vpop.f32.mrb[0].mxu0
        %v1413 = vadd.f32 %v1237, %v1412
        %v1414 = vpop.f32.mrb[0].mxu0
        %1415 = vmatprep.mubr.bf16.mxu0 %v1181
        %1416 = vmatmul.mubr.bf16.gmra.mrb[0].mxu0 %v1180
        %v1417 = vpop.f32.mrb[0].mxu0
        %v1418 = vadd.f32 %v1237, %v1417
        %v1419 = vpop.f32.mrb[0].mxu0
        %v1420 = vpop.f32.mrb[0].mxu0
        %v1421 = vadd.f32 %v1237, %v1420
        %v1422 = vpop.f32.mrb[0].mxu0
        %1423 = vmatprep.mubr.bf16.mxu0 %v1183
        %1424 = vmatmul.mubr.bf16.gmra.mrb[0].mxu0 %v1182
        %v1425 = vpop.f32.mrb[0].mxu0
        %v1426 = vadd.f32 %v1237, %v1425
        %v1427 = vpop.f32.mrb[0].mxu0
        %v1428 = vpop.f32.mrb[0].mxu0
        %v1429 = vadd.f32 %v1237, %v1428
        %v1430 = vpop.f32.mrb[0].mxu0
        %1431 = vmatprep.mubr.bf16.mxu0 %v1185
        %1432 = vmatmul.mubr.bf16.gmra.mrb[0].mxu0 %v1184
        %v1433 = vpop.f32.mrb[0].mxu0
        %v1434 = vadd.f32 %v1237, %v1433
        %v1435 = vpop.f32.mrb[0].mxu0
        %v1436 = vpop.f32.mrb[0].mxu0
        %v1437 = vadd.f32 %v1237, %v1436
        %v1438 = vpop.f32.mrb[0].mxu0
        %1439 = vmatprep.mubr.bf16.mxu0 %v1187
        %1440 = vmatmul.mubr.bf16.gmra.mrb[0].mxu0 %v1186
        %v1441 = vpop.f32.mrb[0].mxu0
        %v1442 = vadd.f32 %v1237, %v1441
        %v1443 = vpop.f32.mrb[0].mxu0
        %v1444 = vpop.f32.mrb[0].mxu0
        %v1445 = vadd.f32 %v1237, %v1444
        %v1446 = vpop.f32.mrb[0].mxu0
        %1447 = vmatprep.mubr.bf16.mxu0 %v1189
        %1448 = vmatmul.mubr.bf16.gmra.mrb[0].mxu0 %v1188
        %v1449 = vpop.f32.mrb[0].mxu0
        %v1450 = vadd.f32 %v1237, %v1449
        %v1451 = vpop.f32.mrb[0].mxu0
        %v1452 = vpop.f32.mrb[0].mxu0
        %v1453 = vadd.f32 %v1237, %v1452
        %v1454 = vpop.f32.mrb[0].mxu0
        %1455 = vmatprep.mubr.bf16.mxu0 %v1191
        %1456 = vmatmul.mubr.bf16.gmra.mrb[0].mxu0 %v1190
        %v1457 = vpop.f32.mrb[0].mxu0
        %v1458 = vadd.f32 %v1237, %v1457
        %v1459 = vpop.f32.mrb[0].mxu0
        %v1460 = vpop.f32.mrb[0].mxu0
        %v1461 = vadd.f32 %v1237, %v1460
        %v1462 = vpop.f32.mrb[0].mxu0
        %1463 = vmatprep.mubr.bf16.mxu0 %v1193
        %1464 = vmatmul.mubr.bf16.gmra.mrb[0].mxu0 %v1192
        %v1465 = vpop.f32.mrb[0].mxu0
        %v1466 = vadd.f32 %v1237, %v1465
        %v1467 = vpop.f32.mrb[0].mxu0
        %v1468 = vpop.f32.mrb[0].mxu0
        %v1469 = vadd.f32 %v1237, %v1468
        %v1470 = vpop.f32.mrb[0].mxu0
        %1471 = vmatprep.mubr.bf16.mxu0 %v1195
        %1472 = vmatmul.mubr.bf16.gmra.mrb[0].mxu0 %v1194
        %v1473 = vpop.f32.mrb[0].mxu0
        %v1474 = vadd.f32 %v1237, %v1473
        %v1475 = vpop.f32.mrb[0].mxu0
        %v1476 = vpop.f32.mrb[0].mxu0
        %v1477 = vadd.f32 %v1237, %v1476
        %v1478 = vpop.f32.mrb[0].mxu0
        %1479 = vmatprep.mubr.bf16.mxu0 %v1197
        %1480 = vmatmul.mubr.bf16.gmra.mrb[0].mxu0 %v1196
        %v1481 = vpop.f32.mrb[0].mxu0
        %v1482 = vadd.f32 %v1237, %v1481
        %v1483 = vpop.f32.mrb[0].mxu0
        %v1484 = vpop.f32.mrb[0].mxu0
        %v1485 = vadd.f32 %v1237, %v1484
        %v1486 = vpop.f32.mrb[0].mxu0
        %1487 = vmatprep.mubr.bf16.mxu0 %v1199
        %1488 = vmatmul.mubr.bf16.gmra.mrb[0].mxu0 %v1198
        %v1489 = vpop.f32.mrb[0].mxu0
        %v1490 = vadd.f32 %v1237, %v1489
        %v1491 = vpop.f32.mrb[0].mxu0
        %v1492 = vpop.f32.mrb[0].mxu0
        %v1493 = vadd.f32 %v1237, %v1492
        %v1494 = vpop.f32.mrb[0].mxu0
        %1495 = vdwg.mxu0
        %1496 = vst [vmem:[%s218] sm:$0xff] %v1370
        %1497 = vst [vmem:[%s218 + $0x8] sm:$0xff] %v1373
        %1498 = vst [vmem:[%s218 + $0x10] sm:$0xff] %v1378
        %1499 = vst [vmem:[%s218 + $0x18] sm:$0xff] %v1381
        %1500 = vst [vmem:[%s218 + $0x20] sm:$0xff] %v1386
        %1501 = vst [vmem:[%s218 + $0x28] sm:$0xff] %v1389
        %1502 = vst [vmem:[%s218 + $0x30] sm:$0xff] %v1394
        %1503 = vst [vmem:[%s218 + $0x38] sm:$0xff] %v1397
        %1504 = vst [vmem:[%s218 + $0x40] sm:$0xff] %v1402
        %1505 = vst [vmem:[%s218 + $0x48] sm:$0xff] %v1405
        %1506 = vst [vmem:[%s218 + $0x50] sm:$0xff] %v1410
        %1507 = vst [vmem:[%s218 + $0x58] sm:$0xff] %v1413
        %1508 = vst [vmem:[%s218 + $0x60] sm:$0xff] %v1418
        %1509 = vst [vmem:[%s218 + $0x68] sm:$0xff] %v1421
        %1510 = vst [vmem:[%s218 + $0x70] sm:$0xff] %v1426
        %1511 = vst [vmem:[%s218 + $0x78] sm:$0xff] %v1429
        %1512 = vst [vmem:[%s218 + $0x80] sm:$0xff] %v1434
        %1513 = vst [vmem:[%s218 + $0x88] sm:$0xff] %v1437
        %1514 = vst [vmem:[%s218 + $0x90] sm:$0xff] %v1442
        %1515 = vst [vmem:[%s218 + $0x98] sm:$0xff] %v1445
        %1516 = vst [vmem:[%s218 + $0xa0] sm:$0xff] %v1450
        %1517 = vst [vmem:[%s218 + $0xa8] sm:$0xff] %v1453
        %1518 = vst [vmem:[%s218 + $0xb0] sm:$0xff] %v1458
        %1519 = vst [vmem:[%s218 + $0xb8] sm:$0xff] %v1461
        %1520 = vst [vmem:[%s218 + $0xc0] sm:$0xff] %v1466
        %1521 = vst [vmem:[%s218 + $0xc8] sm:$0xff] %v1469
        %1522 = vst [vmem:[%s218 + $0xd0] sm:$0xff] %v1474
        %1523 = vst [vmem:[%s218 + $0xd8] sm:$0xff] %v1477
        %1524 = vst [vmem:[%s218 + $0xe0] sm:$0xff] %v1482
        %1525 = vst [vmem:[%s218 + $0xe8] sm:$0xff] %v1485
        %1526 = vst [vmem:[%s218 + $0xf0] sm:$0xff] %v1490
        %1527 = vst [vmem:[%s218 + $0xf8] sm:$0xff] %v1493
        %s1528 = sand.u32 %s137, 1
        %s1529 = scalar_lea.sflag [#allocation3], %s1528
        %s1530 = sand.u32 %s137, 1
        %s1531 = smul.addr %s1530, 256
        %s1532 = scalar_lea.vmem [#allocation2], %s1531
        // Predicated region
        $region41: #{_mlp_pallas.1} parent=39 // pred_check
          %p1533 = pneg %p147
        $region42: #{_mlp_pallas.1} parent=39 // pred_check_branch
          %1535 = sbr.rel (%p1533) target = $region44
        $region43: #{_mlp_pallas.1} parent=39 // pred_region
          %s1536 = smul.u32 32, %s19
          %s1538 = ssub.s32 4096, 4096
          %1539 = vsyncadd %s1529, %s1538
          %s1540 = smul.addr %s1536, 128
          %s1541 = scalar_lea.hbm %s5, %s1540
          %s1542 = sshll.u32 %s1532, 4
          %s1543 = int_to_ptr.vmem [resolvable:$true] %s1542
          %1548 = dma.vmem_to_hbm [thread:$0]  %s1543, 4096, %s1541, %s1529, 128, 128, 8
        $region44: #{_mlp_pallas.1} parent=39 // pred_fallthru
          _
      $region40: #{_mlp_pallas.1} parent=5 // pred_fallthru
        _
      %p1549 = scmp.le.s32.totalorder 2, %s14
      // Predicated region
      $region45: #{_mlp_pallas.1} parent=5 // pred_check
        %p1550 = pneg %p1549
      $region46: #{_mlp_pallas.1} parent=5 // pred_check_branch
        %1552 = sbr.rel (%p1550) target = $region48
      $region47: #{_mlp_pallas.1} parent=5 // pred_region
        %s1553 = ssub.s32 %s14, 2
        // Predicated region
        $region49: #{_mlp_pallas.1} parent=47 // pred_check
          %p1554 = pneg %p153
        $region50: #{_mlp_pallas.1} parent=47 // pred_check_branch
          %1556 = sbr.rel (%p1554) target = $region52
        $region51: #{_mlp_pallas.1} parent=47 // pred_region
          %s1557 = sand.u32 %s138, 1
          %s1558 = scalar_lea.sflag [#allocation3], %s1557
          %s1559 = sand.u32 %s138, 1
          %s1560 = smul.addr %s1559, 256
          %s1561 = scalar_lea.vmem [#allocation2], %s1560
          %1562 = dma.done %s1558, 4096
        $region52: #{_mlp_pallas.1} parent=47 // pred_fallthru
          _
      $region48: #{_mlp_pallas.1} parent=5 // pred_fallthru
        _
    $region6: #{_mlp_pallas.1} parent=1 // loop_footer
      %s18 = sadd.s32 1, %s14
    $region7: #{_mlp_pallas.1} parent=1 // loop_footer_branch
      %13 = sbr.rel target = $region3
    $region8: #{_mlp_pallas.1} parent=1 // loop_exit
      _
    %1563 = vsyncpa [#allocation3], 1
    %s1564 = scalar_lea.sflag [#allocation3], 1
    %1565 = vsyncpa %s1564, 1

</llo_original>
